<compile_context>
chip_gen: v5e
topology: v5e:2x2
jax: 0.10.0
libtpu: 0.0.40
codegen_flags: <defaults>
</compile_context>

<pallas_src>
import functools

import jax
import jax.numpy as jnp
from jax.experimental import pallas as pl
from jax.experimental.pallas import tpu as pltpu


# ---------------------------------------------------------------------------
# Pallas kernel: fused 3-layer MLP, transposed layout, in-kernel agent loop
# ---------------------------------------------------------------------------
def _critic_mlp_kernel(s_ref, a_ref, w1s_ref, w1a_ref, w2_ref, slab_ref,
                       b3_ref, o_ref, *, N, tb):
    """One grid step = rows i*tb..(i+1)*tb of T*B, all N agents."""
    slab = slab_ref[...]                      # (H, N+2) f32 resident slab
    b2 = slab[:, N:N + 1]                     # (H, 1)
    w3 = slab[:, N + 1:N + 2]                 # (H, 1)

    # Layer-1 state contribution: one matmul per row block, shared by agents.
    h_s = jnp.dot(w1s_ref[...], s_ref[...],
                  preferred_element_type=jnp.float32)               # (H, tb) f32

    # Layer 1 per agent (static unroll; N is small), batched layer 2.
    h1_cols = []
    for n in range(N):
        h1n = h_s + jnp.dot(w1a_ref[...], a_ref[n],
                            preferred_element_type=jnp.float32)     # (H, tb)
        h1n = jnp.maximum(h1n + slab[:, n:n + 1], 0.0)              # f32 VPU
        h1_cols.append(h1n)
    h1 = jnp.concatenate(h1_cols, axis=1).astype(jnp.bfloat16)      # (H, N*tb)

    # One wide matmul keeps w2 hot and fills the 256-wide MXU (v6e/v7x).
    h2 = jnp.dot(w2_ref[...], h1, preferred_element_type=jnp.float32)
    h2 = jnp.maximum(h2 + b2, 0.0)                                  # (H, N*tb) f32

    # Final H->1 layer: VPU multiply + XLU sublane reduce, lane-dense rows.
    q_rows = []
    for n in range(N):
        h2n = h2[:, n * tb:(n + 1) * tb]                            # aligned slice
        q_rows.append(jnp.sum(h2n * w3, axis=0, keepdims=True))     # (1, tb)
    o_ref[...] = jnp.concatenate(q_rows, axis=0) + b3_ref[0, 0]     # (N, tb)


def _vmem_bytes_estimate(S, A, N, H, tb):
    """Rough per-step VMEM budget (double-buffered blocks + live values)."""
    bf2, f4 = 2, 4
    su = lambda d: pl.cdiv(d, 8) * 8
    la = lambda d: pl.cdiv(d, 128) * 128
    blocks = 2 * (su(S) * tb * bf2            # states block
                  + N * su(A) * tb * bf2      # actions block
                  + su(N) * tb * f4)          # output block
    weights = 2 * (su(H) * la(S) * bf2 + su(H) * la(A) * bf2
                   + su(H) * la(H) * bf2 + su(H) * la(N + 2) * f4)
    live = (su(H) * tb * f4                   # h_s
            + su(H) * N * tb * (f4 + bf2)     # h1 (f32 + bf16 copy)
            + su(H) * N * tb * f4             # h2
            + 2 * su(N) * tb * f4)            # q staging
    return blocks + weights + live


# ---------------------------------------------------------------------------
# Module wrapper
# ---------------------------------------------------------------------------
def state_and_action_critic_forward(states, agent_actions, params,
                                    add_agent_id=True, block_rows=None):
    T, B, S = states.shape
    _, _, N, A = agent_actions.shape
    H = params["w2"].shape[0]
    w1, b1 = params["w1"], params["b1"]            # (D_in, H), (1, H)

    # Split layer 1; fold the one-hot agent-id columns into a per-agent bias.
    if add_agent_id:
        assert w1.shape[0] == N + S + A
        w1_id, w1_s, w1_a = w1[:N], w1[N:N + S], w1[N + S:]
        b1_agent = b1 + w1_id                      # (N, H), exact fold
    else:
        assert w1.shape[0] == S + A
        w1_s, w1_a = w1[:S], w1[S:]
        b1_agent = jnp.broadcast_to(b1, (N, H))

    TB = T * B
    if block_rows is None:
        block_rows = 2048                          # amortize per-step overhead
    tb = max(128, pl.cdiv(block_rows, 256) * 256)
    TB_rounded = max(pl.cdiv(TB, 128) * 128, 128)
    tb = min(tb, TB_rounded)
    # v7x megacore: keep >= 2 steps on the single "parallel" grid axis.
    if tb >= TB_rounded and TB_rounded >= 256:
        tb = pl.cdiv(TB_rounded // 2, 128) * 128
    TBpad = pl.cdiv(TB, tb) * tb

    # Transposed, row-padded, bf16 MXU inputs (rows on the lane axis).
    # TODO(synk): for very large T*B this pad+transpose pre-pass is an extra
    # HBM round trip; replace with a masked tail block / feature-major
    # upstream layout if it ever rivals the kernel's own traffic.
    sT = jnp.pad(states.reshape(TB, S).T,
                 ((0, 0), (0, TBpad - TB))).astype(jnp.bfloat16)      # (S, TBpad)
    aT = jnp.transpose(agent_actions.reshape(TB, N, A), (1, 2, 0))    # (N, A, TB)
    aT = jnp.pad(aT, ((0, 0), (0, 0), (0, TBpad - TB))).astype(jnp.bfloat16)

    # Transposed parameters (weights act from the left); MXU operands bf16.
    w1sT = w1_s.T.astype(jnp.bfloat16)             # (H, S)
    w1aT = w1_a.T.astype(jnp.bfloat16)             # (H, A)
    w2T = params["w2"].T.astype(jnp.bfloat16)      # (H, H)
    # One resident f32 slab: cols [0..N) = per-agent layer-1 bias,
    # col N = b2, col N+1 = w3.
    slab = jnp.concatenate([b1_agent.T,
                            params["b2"].reshape(H, 1),
                            params["w3"].reshape(H, 1)],
                           axis=1).astype(jnp.float32)                # (H, N+2)
    b3 = params["b3"].reshape(1, 1).astype(jnp.float32)               # SMEM scalar

    flops = int(2 * TBpad * (H * S + N * (H * A + H * H + H)))
    bytes_accessed = int(sT.size * 2 + aT.size * 2 + slab.size * 4
                         + (w1sT.size + w1aT.size + w2T.size) * 2
                         + N * TBpad * 4)
    est = _vmem_bytes_estimate(S, A, N, H, tb)
    vmem_limit = int(min(max(2 * est + (8 << 20), 32 << 20), 64 << 20))

    kernel = functools.partial(_critic_mlp_kernel, N=N, tb=tb)
    grid = (TBpad // tb,)
    q = pl.pallas_call(
        kernel,
        out_shape=jax.ShapeDtypeStruct((N, TBpad), jnp.float32),
        grid=grid,
        in_specs=[
            pl.BlockSpec((S, tb), lambda i: (0, i)),          # states
            pl.BlockSpec((N, A, tb), lambda i: (0, 0, i)),    # all agents' actions
            pl.BlockSpec((H, S), lambda i: (0, 0)),           # w1_s^T (resident)
            pl.BlockSpec((H, A), lambda i: (0, 0)),           # w1_a^T (resident)
            pl.BlockSpec((H, H), lambda i: (0, 0)),           # w2^T   (resident)
            pl.BlockSpec((H, N + 2), lambda i: (0, 0)),       # bias/w3 slab
            pl.BlockSpec(memory_space=pltpu.MemorySpace.SMEM),  # b3 scalar
        ],
        out_specs=pl.BlockSpec((N, tb), lambda i: (0, i)),
        compiler_params=pltpu.CompilerParams(
            dimension_semantics=("parallel",),
            vmem_limit_bytes=vmem_limit),
        cost_estimate=pl.CostEstimate(flops=flops, transcendentals=0,
                                      bytes_accessed=bytes_accessed),
    )(sT, aT, w1sT, w1aT, w2T, slab, b3)

    q = q[:, :TB].T                                # (TB, N)
    return q.reshape(T, B, N, 1)


# ---------------------------------------------------------------------------
# Deterministic parameter init (PyTorch nn.Linear-style uniform bounds)
# ---------------------------------------------------------------------------
def init_params(key, input_dim, hidden_dim):
    # TODO(synk): the original __init__ sets input_dim = state_dim + num_actions
    # even when add_agent_id=True (which would shape-error in PyTorch); here the
    # first layer is sized to the actual forward-pass input width.
    ks = jax.random.split(key, 6)

    def linear(kw, kb, fan_in, fan_out):
        bound = 1.0 / (fan_in ** 0.5)
        w = jax.random.uniform(kw, (fan_in, fan_out), jnp.float32, -bound, bound)
        b = jax.random.uniform(kb, (1, fan_out), jnp.float32, -bound, bound)
        return w, b

    w1, b1 = linear(ks[0], ks[1], input_dim, hidden_dim)
    w2, b2 = linear(ks[2], ks[3], hidden_dim, hidden_dim)
    w3, b3 = linear(ks[4], ks[5], hidden_dim, 1)
    return dict(w1=w1, b1=b1, w2=w2, b2=b2, w3=w3, b3=b3)


# ---------------------------------------------------------------------------
# Pure-JAX reference (mirrors the PyTorch forward exactly, f32)
# ---------------------------------------------------------------------------
def _reference_forward(states, agent_actions, params, add_agent_id=True):
    T, B, S = states.shape
    _, _, N, A = agent_actions.shape
    states_rep = jnp.broadcast_to(states[:, :, None, :], (T, B, N, S))
    x = jnp.concatenate([states_rep, agent_actions], axis=-1)
    if add_agent_id:
        ids = jnp.broadcast_to(jnp.eye(N, dtype=x.dtype)[None, None],
                               (T, B, N, N))
        x = jnp.concatenate([ids, x], axis=-1)
    h1 = jnp.maximum(x @ params["w1"] + params["b1"][0], 0.0)
    h2 = jnp.maximum(h1 @ params["w2"] + params["b2"][0], 0.0)
    return h2 @ params["w3"] + params["b3"]


if __name__ == "__main__":
    # Small shapes consistent with the module (hidden_dim keeps the 128 default).
    T, B, S, N, A, H = 4, 2, 12, 4, 5, 128
    add_agent_id = True

    key = jax.random.PRNGKey(0)
    k_s, k_a, k_p = jax.random.split(key, 3)
    states = jax.random.normal(k_s, (T, B, S), dtype=jnp.float32)
    agent_actions = jax.random.normal(k_a, (T, B, N, A), dtype=jnp.float32)

    input_dim = (N if add_agent_id else 0) + S + A
    params = init_params(k_p, input_dim, H)

    q = state_and_action_critic_forward(states, agent_actions, params,
                                        add_agent_id=add_agent_id)
    q = jax.block_until_ready(q)
    assert q.shape == (T, B, N, 1), q.shape

    q_ref = _reference_forward(states, agent_actions, params, add_agent_id)
    # bf16 MXU operands (f32 accumulation) vs an all-f32 reference: relaxed tol.
    err = float(jnp.max(jnp.abs(q - q_ref)))
    scale = max(1.0, float(jnp.max(jnp.abs(q_ref))))
    assert err <= 8e-2 * scale, (err, scale)

    print("KERNEL_OK")
</pallas_src>

<mosaic_0001>
module attributes {stable_mosaic.version = 11 : i64} {
  func.func @_critic_mlp_kernel(%arg0: i32, %arg1: memref<12x128xbf16, #tpu.memory_space<vmem>>, %arg2: memref<4x5x128xbf16, #tpu.memory_space<vmem>>, %arg3: memref<128x12xbf16, #tpu.memory_space<vmem>>, %arg4: memref<128x5xbf16, #tpu.memory_space<vmem>>, %arg5: memref<128x128xbf16, #tpu.memory_space<vmem>>, %arg6: memref<128x6xf32, #tpu.memory_space<vmem>>, %arg7: memref<1x1xf32, #tpu.memory_space<smem>>, %arg8: memref<4x128xf32, #tpu.memory_space<vmem>>) attributes {dimension_semantics = [#tpu.dimension_semantics<parallel>], iteration_bounds = array<i64: 1>, scalar_prefetch = 0 : i64, scratch_operands = 0 : i64, tpu.core_type = #tpu.core_type<tc>, window_params = [{transform_indices = @transform_0, window_bounds = array<i64: 12, 128>}, {transform_indices = @transform_1, window_bounds = array<i64: 4, 5, 128>}, {pipeline_mode = #tpu.pipeline_mode<synchronous>, transform_indices = @transform_2, window_bounds = array<i64: 128, 12>}, {pipeline_mode = #tpu.pipeline_mode<synchronous>, transform_indices = @transform_3, window_bounds = array<i64: 128, 5>}, {pipeline_mode = #tpu.pipeline_mode<synchronous>, transform_indices = @transform_4, window_bounds = array<i64: 128, 128>}, {pipeline_mode = #tpu.pipeline_mode<synchronous>, transform_indices = @transform_5, window_bounds = array<i64: 128, 6>}, {transform_indices = @transform_6, window_bounds = array<i64: 1, 1>}, {transform_indices = @transform_7, window_bounds = array<i64: 4, 128>}]} {
    %c0 = arith.constant 0 : index
    %c0_0 = arith.constant 0 : index
    %0 = vector.load %arg6[%c0, %c0_0] : memref<128x6xf32, #tpu.memory_space<vmem>>, vector<128x6xf32>
    %1 = vector.extract_strided_slice %0 {offsets = [0, 4], sizes = [128, 1], strides = [1, 1]} : vector<128x6xf32> to vector<128x1xf32>
    %2 = vector.extract_strided_slice %0 {offsets = [0, 5], sizes = [128, 1], strides = [1, 1]} : vector<128x6xf32> to vector<128x1xf32>
    %c0_1 = arith.constant 0 : index
    %c0_2 = arith.constant 0 : index
    %3 = vector.load %arg3[%c0_1, %c0_2] : memref<128x12xbf16, #tpu.memory_space<vmem>>, vector<128x12xbf16>
    %c0_3 = arith.constant 0 : index
    %c0_4 = arith.constant 0 : index
    %4 = vector.load %arg1[%c0_3, %c0_4] : memref<12x128xbf16, #tpu.memory_space<vmem>>, vector<12x128xbf16>
    %cst = arith.constant dense<0.000000e+00> : vector<128x128xf32>
    %5 = tpu.matmul %3, %4, %cst {dimension_numbers = #tpu.dot_dimension_numbers<[1], [0], [0], [1], [0, 0, 1, 1], [], []>} : vector<128x12xbf16>, vector<12x128xbf16>, vector<128x128xf32> -> vector<128x128xf32>
    %c0_5 = arith.constant 0 : index
    %c0_6 = arith.constant 0 : index
    %6 = vector.load %arg4[%c0_5, %c0_6] : memref<128x5xbf16, #tpu.memory_space<vmem>>, vector<128x5xbf16>
    %c0_7 = arith.constant 0 : index
    %c0_8 = arith.constant 0 : index
    %c0_9 = arith.constant 0 : index
    %7 = vector.load %arg2[%c0_7, %c0_8, %c0_9] : memref<4x5x128xbf16, #tpu.memory_space<vmem>>, vector<1x5x128xbf16>
    %8 = vector.shape_cast %7 : vector<1x5x128xbf16> to vector<5x128xbf16>
    %cst_10 = arith.constant dense<0.000000e+00> : vector<128x128xf32>
    %9 = tpu.matmul %6, %8, %cst_10 {dimension_numbers = #tpu.dot_dimension_numbers<[1], [0], [0], [1], [0, 0, 1, 1], [], []>} : vector<128x5xbf16>, vector<5x128xbf16>, vector<128x128xf32> -> vector<128x128xf32>
    %10 = arith.addf %5, %9 : vector<128x128xf32>
    %11 = vector.extract_strided_slice %0 {offsets = [0, 0], sizes = [128, 1], strides = [1, 1]} : vector<128x6xf32> to vector<128x1xf32>
    %12 = vector.broadcast %11 : vector<128x1xf32> to vector<128x128xf32>
    %13 = arith.addf %10, %12 : vector<128x128xf32>
    %cst_11 = arith.constant 0.000000e+00 : f32
    %14 = vector.broadcast %cst_11 : f32 to vector<128x128xf32>
    %15 = arith.maximumf %13, %14 : vector<128x128xf32>
    %c0_12 = arith.constant 0 : index
    %c0_13 = arith.constant 0 : index
    %16 = vector.load %arg4[%c0_12, %c0_13] : memref<128x5xbf16, #tpu.memory_space<vmem>>, vector<128x5xbf16>
    %c1 = arith.constant 1 : index
    %c0_14 = arith.constant 0 : index
    %c0_15 = arith.constant 0 : index
    %17 = vector.load %arg2[%c1, %c0_14, %c0_15] : memref<4x5x128xbf16, #tpu.memory_space<vmem>>, vector<1x5x128xbf16>
    %18 = vector.shape_cast %17 : vector<1x5x128xbf16> to vector<5x128xbf16>
    %cst_16 = arith.constant dense<0.000000e+00> : vector<128x128xf32>
    %19 = tpu.matmul %16, %18, %cst_16 {dimension_numbers = #tpu.dot_dimension_numbers<[1], [0], [0], [1], [0, 0, 1, 1], [], []>} : vector<128x5xbf16>, vector<5x128xbf16>, vector<128x128xf32> -> vector<128x128xf32>
    %20 = arith.addf %5, %19 : vector<128x128xf32>
    %21 = vector.extract_strided_slice %0 {offsets = [0, 1], sizes = [128, 1], strides = [1, 1]} : vector<128x6xf32> to vector<128x1xf32>
    %22 = vector.broadcast %21 : vector<128x1xf32> to vector<128x128xf32>
    %23 = arith.addf %20, %22 : vector<128x128xf32>
    %cst_17 = arith.constant 0.000000e+00 : f32
    %24 = vector.broadcast %cst_17 : f32 to vector<128x128xf32>
    %25 = arith.maximumf %23, %24 : vector<128x128xf32>
    %c0_18 = arith.constant 0 : index
    %c0_19 = arith.constant 0 : index
    %26 = vector.load %arg4[%c0_18, %c0_19] : memref<128x5xbf16, #tpu.memory_space<vmem>>, vector<128x5xbf16>
    %c2 = arith.constant 2 : index
    %c0_20 = arith.constant 0 : index
    %c0_21 = arith.constant 0 : index
    %27 = vector.load %arg2[%c2, %c0_20, %c0_21] : memref<4x5x128xbf16, #tpu.memory_space<vmem>>, vector<1x5x128xbf16>
    %28 = vector.shape_cast %27 : vector<1x5x128xbf16> to vector<5x128xbf16>
    %cst_22 = arith.constant dense<0.000000e+00> : vector<128x128xf32>
    %29 = tpu.matmul %26, %28, %cst_22 {dimension_numbers = #tpu.dot_dimension_numbers<[1], [0], [0], [1], [0, 0, 1, 1], [], []>} : vector<128x5xbf16>, vector<5x128xbf16>, vector<128x128xf32> -> vector<128x128xf32>
    %30 = arith.addf %5, %29 : vector<128x128xf32>
    %31 = vector.extract_strided_slice %0 {offsets = [0, 2], sizes = [128, 1], strides = [1, 1]} : vector<128x6xf32> to vector<128x1xf32>
    %32 = vector.broadcast %31 : vector<128x1xf32> to vector<128x128xf32>
    %33 = arith.addf %30, %32 : vector<128x128xf32>
    %cst_23 = arith.constant 0.000000e+00 : f32
    %34 = vector.broadcast %cst_23 : f32 to vector<128x128xf32>
    %35 = arith.maximumf %33, %34 : vector<128x128xf32>
    %c0_24 = arith.constant 0 : index
    %c0_25 = arith.constant 0 : index
    %36 = vector.load %arg4[%c0_24, %c0_25] : memref<128x5xbf16, #tpu.memory_space<vmem>>, vector<128x5xbf16>
    %c3 = arith.constant 3 : index
    %c0_26 = arith.constant 0 : index
    %c0_27 = arith.constant 0 : index
    %37 = vector.load %arg2[%c3, %c0_26, %c0_27] : memref<4x5x128xbf16, #tpu.memory_space<vmem>>, vector<1x5x128xbf16>
    %38 = vector.shape_cast %37 : vector<1x5x128xbf16> to vector<5x128xbf16>
    %cst_28 = arith.constant dense<0.000000e+00> : vector<128x128xf32>
    %39 = tpu.matmul %36, %38, %cst_28 {dimension_numbers = #tpu.dot_dimension_numbers<[1], [0], [0], [1], [0, 0, 1, 1], [], []>} : vector<128x5xbf16>, vector<5x128xbf16>, vector<128x128xf32> -> vector<128x128xf32>
    %40 = arith.addf %5, %39 : vector<128x128xf32>
    %41 = vector.extract_strided_slice %0 {offsets = [0, 3], sizes = [128, 1], strides = [1, 1]} : vector<128x6xf32> to vector<128x1xf32>
    %42 = vector.broadcast %41 : vector<128x1xf32> to vector<128x128xf32>
    %43 = arith.addf %40, %42 : vector<128x128xf32>
    %cst_29 = arith.constant 0.000000e+00 : f32
    %44 = vector.broadcast %cst_29 : f32 to vector<128x128xf32>
    %45 = arith.maximumf %43, %44 : vector<128x128xf32>
    %46 = tpu.concatenate %15, %25, %35, %45 in 1 : vector<128x128xf32>, vector<128x128xf32>, vector<128x128xf32>, vector<128x128xf32> -> vector<128x512xf32>
    %47 = arith.truncf %46 : vector<128x512xf32> to vector<128x512xbf16>
    %c0_30 = arith.constant 0 : index
    %c0_31 = arith.constant 0 : index
    %48 = vector.load %arg5[%c0_30, %c0_31] : memref<128x128xbf16, #tpu.memory_space<vmem>>, vector<128x128xbf16>
    %cst_32 = arith.constant dense<0.000000e+00> : vector<128x512xf32>
    %49 = tpu.matmul %48, %47, %cst_32 {dimension_numbers = #tpu.dot_dimension_numbers<[1], [0], [0], [1], [0, 0, 1, 1], [], []>} : vector<128x128xbf16>, vector<128x512xbf16>, vector<128x512xf32> -> vector<128x512xf32>
    %50 = vector.broadcast %1 : vector<128x1xf32> to vector<128x512xf32>
    %51 = arith.addf %49, %50 : vector<128x512xf32>
    %cst_33 = arith.constant 0.000000e+00 : f32
    %52 = vector.broadcast %cst_33 : f32 to vector<128x512xf32>
    %53 = arith.maximumf %51, %52 : vector<128x512xf32>
    %54 = vector.extract_strided_slice %53 {offsets = [0, 0], sizes = [128, 128], strides = [1, 1]} : vector<128x512xf32> to vector<128x128xf32>
    %55 = vector.broadcast %2 : vector<128x1xf32> to vector<128x128xf32>
    %56 = arith.mulf %54, %55 : vector<128x128xf32>
    %cst_34 = arith.constant dense<0.000000e+00> : vector<128xf32>
    %57 = vector.multi_reduction <add>, %56, %cst_34 [0] : vector<128x128xf32> to vector<128xf32>
    %58 = vector.shape_cast %57 : vector<128xf32> to vector<1x128xf32>
    %59 = vector.extract_strided_slice %53 {offsets = [0, 128], sizes = [128, 128], strides = [1, 1]} : vector<128x512xf32> to vector<128x128xf32>
    %60 = vector.broadcast %2 : vector<128x1xf32> to vector<128x128xf32>
    %61 = arith.mulf %59, %60 : vector<128x128xf32>
    %cst_35 = arith.constant dense<0.000000e+00> : vector<128xf32>
    %62 = vector.multi_reduction <add>, %61, %cst_35 [0] : vector<128x128xf32> to vector<128xf32>
    %63 = vector.shape_cast %62 : vector<128xf32> to vector<1x128xf32>
    %64 = vector.extract_strided_slice %53 {offsets = [0, 256], sizes = [128, 128], strides = [1, 1]} : vector<128x512xf32> to vector<128x128xf32>
    %65 = vector.broadcast %2 : vector<128x1xf32> to vector<128x128xf32>
    %66 = arith.mulf %64, %65 : vector<128x128xf32>
    %cst_36 = arith.constant dense<0.000000e+00> : vector<128xf32>
    %67 = vector.multi_reduction <add>, %66, %cst_36 [0] : vector<128x128xf32> to vector<128xf32>
    %68 = vector.shape_cast %67 : vector<128xf32> to vector<1x128xf32>
    %69 = vector.extract_strided_slice %53 {offsets = [0, 384], sizes = [128, 128], strides = [1, 1]} : vector<128x512xf32> to vector<128x128xf32>
    %70 = vector.broadcast %2 : vector<128x1xf32> to vector<128x128xf32>
    %71 = arith.mulf %69, %70 : vector<128x128xf32>
    %cst_37 = arith.constant dense<0.000000e+00> : vector<128xf32>
    %72 = vector.multi_reduction <add>, %71, %cst_37 [0] : vector<128x128xf32> to vector<128xf32>
    %73 = vector.shape_cast %72 : vector<128xf32> to vector<1x128xf32>
    %74 = tpu.concatenate %58, %63, %68, %73 in 0 : vector<1x128xf32>, vector<1x128xf32>, vector<1x128xf32>, vector<1x128xf32> -> vector<4x128xf32>
    %c0_38 = arith.constant 0 : index
    %c0_39 = arith.constant 0 : index
    %75 = memref.load %arg7[%c0_38, %c0_39] : memref<1x1xf32, #tpu.memory_space<smem>>
    %76 = vector.broadcast %75 : f32 to vector<4x128xf32>
    %77 = arith.addf %74, %76 : vector<4x128xf32>
    %c0_40 = arith.constant 0 : index
    %c0_41 = arith.constant 0 : index
    %78 = vector.load %arg8[%c0_40, %c0_41] : memref<4x128xf32, #tpu.memory_space<vmem>>, vector<4x128xf32>
    tpu.vector_store %arg8[%c0_40, %c0_41], %77 {strides = array<i32>} : memref<4x128xf32, #tpu.memory_space<vmem>>, vector<4x128xf32>,
    return
  }
  func.func @transform_0(%arg0: i32) -> (i32, i32) {
    %c0_i32 = arith.constant 0 : i32
    %c0_i32_0 = arith.constant 0 : i32
    return %c0_i32, %arg0 : i32, i32
  }
  func.func @transform_1(%arg0: i32) -> (i32, i32, i32) {
    %c0_i32 = arith.constant 0 : i32
    %c0_i32_0 = arith.constant 0 : i32
    %c0_i32_1 = arith.constant 0 : i32
    return %c0_i32, %c0_i32_0, %arg0 : i32, i32, i32
  }
  func.func @transform_2(%arg0: i32) -> (i32, i32) {
    %c0_i32 = arith.constant 0 : i32
    %c0_i32_0 = arith.constant 0 : i32
    %c0_i32_1 = arith.constant 0 : i32
    return %c0_i32, %c0_i32_0 : i32, i32
  }
  func.func @transform_3(%arg0: i32) -> (i32, i32) {
    %c0_i32 = arith.constant 0 : i32
    %c0_i32_0 = arith.constant 0 : i32
    %c0_i32_1 = arith.constant 0 : i32
    return %c0_i32, %c0_i32_0 : i32, i32
  }
  func.func @transform_4(%arg0: i32) -> (i32, i32) {
    %c0_i32 = arith.constant 0 : i32
    %c0_i32_0 = arith.constant 0 : i32
    %c0_i32_1 = arith.constant 0 : i32
    return %c0_i32, %c0_i32_0 : i32, i32
  }
  func.func @transform_5(%arg0: i32) -> (i32, i32) {
    %c0_i32 = arith.constant 0 : i32
    %c0_i32_0 = arith.constant 0 : i32
    %c0_i32_1 = arith.constant 0 : i32
    return %c0_i32, %c0_i32_0 : i32, i32
  }
  func.func @transform_6(%arg0: i32) -> (i32, i32) {
    %c0_i32 = arith.constant 0 : i32
    %c0_i32_0 = arith.constant 0 : i32
    %c0_i32_1 = arith.constant 0 : i32
    return %c0_i32, %c0_i32_0 : i32, i32
  }
  func.func @transform_7(%arg0: i32) -> (i32, i32) {
    %c0_i32 = arith.constant 0 : i32
    %c0_i32_0 = arith.constant 0 : i32
    return %c0_i32, %arg0 : i32, i32
  }
}

</mosaic_0001>

<llo_original>
// kernel: tpu_custom_call.1
$region0: #{tpu_custom_call.1}
  #allocation0 [shape = 'u32[]', space=smem, size = 0x4, offset = 0x4, fixed_abs, tag = 'smem constant byte address 0x4 - core index']
  #allocation1 [shape = 'u32[72,128]{1,0:T(1,128)}', space=vmem, size = 0x9000, scoped, tag = 'internal scratch']
  #allocation2 [shape = 'f32[1,1]{1,0:T(1,128)S(6)}', space=smem, size = 0x200, scoped, tag = 'scoped memory for tpu_custom_call.1']
  %s0 = inlined_call_operand.vmem [shape: bf16[12,128], index: 0, kind: input, shape index: {}]
  %s1 = inlined_call_operand.vmem [shape: bf16[4,5,128], index: 1, kind: input, shape index: {}]
  %s2 = inlined_call_operand.vmem [shape: bf16[128,12], index: 2, kind: input, shape index: {}]
  %s3 = inlined_call_operand.vmem [shape: bf16[128,5], index: 3, kind: input, shape index: {}]
  %s4 = inlined_call_operand.vmem [shape: bf16[128,128], index: 4, kind: input, shape index: {}]
  %s5 = inlined_call_operand.vmem [shape: f32[128,6], index: 5, kind: input, shape index: {}]
  %s6 = inlined_call_operand.<no memory space> [shape: f32[1,1], index: 6, kind: input, shape index: {}]
  %s7 = inlined_call_operand.hbm [shape: f32[4,128], index: 7, kind: output, shape index: {}]
  %s8 = sld [smem:[#allocation0]]
  $region38: #{tpu_custom_call.1} parent=0
    _
  %s10 = ssub.s32 1, %s8
  %s11 = scalar_select 0, %s10, %s8
  %12 = sst [smem:[#allocation2]] %s6
  $region1: #{tpu_custom_call.1} parent=0
    #allocation3 [shape = 'u8[2048]{0}', space=vmem, size = 0x800, scoped, tag = 'output window, operand 0, single buffered']
    #allocation4 [shape = 's32[1]{0}', space=sflag, size = 0x4, scoped, tag = 'scoped memory for tpu_custom_call.1']
    %13 = vsyncpa [#allocation4], 0
    // Predicated region
    $region2: #{tpu_custom_call.1} parent=1 // pred_check
      _
    $region3: #{tpu_custom_call.1} parent=1 // pred_check_branch
      %15 = sbr.rel (0) target = $region5
    $region4: #{tpu_custom_call.1} parent=1 // pred_region
      _
    $region5: #{tpu_custom_call.1} parent=1 // pred_fallthru
      _
    // Predicated region
    $region6: #{tpu_custom_call.1} parent=1 // pred_check
      _
    $region7: #{tpu_custom_call.1} parent=1 // pred_check_branch
      %17 = sbr.rel (0) target = $region9
    $region8: #{tpu_custom_call.1} parent=1 // pred_region
      _
    $region9: #{tpu_custom_call.1} parent=1 // pred_fallthru
      _
    // Predicated region
    $region10: #{tpu_custom_call.1} parent=1 // pred_check
      _
    $region11: #{tpu_custom_call.1} parent=1 // pred_check_branch
      %19 = sbr.rel (0) target = $region13
    $region12: #{tpu_custom_call.1} parent=1 // pred_region
      _
    $region13: #{tpu_custom_call.1} parent=1 // pred_fallthru
      _
    // Predicated region
    $region14: #{tpu_custom_call.1} parent=1 // pred_check
      _
    $region15: #{tpu_custom_call.1} parent=1 // pred_check_branch
      %21 = sbr.rel (0) target = $region17
    $region16: #{tpu_custom_call.1} parent=1 // pred_region
      _
    $region17: #{tpu_custom_call.1} parent=1 // pred_fallthru
      _
    // Predicated region
    $region18: #{tpu_custom_call.1} parent=1 // pred_check
      _
    $region19: #{tpu_custom_call.1} parent=1 // pred_check_branch
      %23 = sbr.rel (0) target = $region21
    $region20: #{tpu_custom_call.1} parent=1 // pred_region
      _
    $region21: #{tpu_custom_call.1} parent=1 // pred_fallthru
      _
    // Predicated region
    $region22: #{tpu_custom_call.1} parent=1 // pred_check
      _
    $region23: #{tpu_custom_call.1} parent=1 // pred_check_branch
      %25 = sbr.rel (0) target = $region25
    $region24: #{tpu_custom_call.1} parent=1 // pred_region
      _
    $region25: #{tpu_custom_call.1} parent=1 // pred_fallthru
      _
    // Predicated region
    $region26: #{tpu_custom_call.1} parent=1 // pred_check
      _
    $region27: #{tpu_custom_call.1} parent=1 // pred_check_branch
      %27 = sbr.rel (0) target = $region29
    $region28: #{tpu_custom_call.1} parent=1 // pred_region
      _
    $region29: #{tpu_custom_call.1} parent=1 // pred_fallthru
      _
    %v29 = vld [vmem:[%s5] sm:$0xff]
    %v30 = vld [vmem:[%s5 + $0x8] sm:$0xff]
    %v31 = vld [vmem:[%s5 + $0x10] sm:$0xff]
    %v32 = vld [vmem:[%s5 + $0x18] sm:$0xff]
    %v33 = vld [vmem:[%s5 + $0x20] sm:$0xff]
    %v34 = vld [vmem:[%s5 + $0x28] sm:$0xff]
    %v35 = vld [vmem:[%s5 + $0x30] sm:$0xff]
    %v36 = vld [vmem:[%s5 + $0x38] sm:$0xff]
    %v37 = vld [vmem:[%s5 + $0x40] sm:$0xff]
    %v38 = vld [vmem:[%s5 + $0x48] sm:$0xff]
    %v39 = vld [vmem:[%s5 + $0x50] sm:$0xff]
    %v40 = vld [vmem:[%s5 + $0x58] sm:$0xff]
    %v41 = vld [vmem:[%s5 + $0x60] sm:$0xff]
    %v42 = vld [vmem:[%s5 + $0x68] sm:$0xff]
    %v43 = vld [vmem:[%s5 + $0x70] sm:$0xff]
    %v44 = vld [vmem:[%s5 + $0x78] sm:$0xff]
    %v45 = vld [vmem:[%s2] sm:$0xf]
    %v46 = vld [vmem:[%s2 + $0x4] sm:$0xf]
    %v47 = vld [vmem:[%s2 + $0x8] sm:$0xf]
    %v48 = vld [vmem:[%s2 + $0xc] sm:$0xf]
    %v49 = vld [vmem:[%s2 + $0x10] sm:$0xf]
    %v50 = vld [vmem:[%s2 + $0x14] sm:$0xf]
    %v51 = vld [vmem:[%s2 + $0x18] sm:$0xf]
    %v52 = vld [vmem:[%s2 + $0x1c] sm:$0xf]
    %v53 = vld [vmem:[%s2 + $0x20] sm:$0xf]
    %v54 = vld [vmem:[%s2 + $0x24] sm:$0xf]
    %v55 = vld [vmem:[%s2 + $0x28] sm:$0xf]
    %v56 = vld [vmem:[%s2 + $0x2c] sm:$0xf]
    %v57 = vld [vmem:[%s2 + $0x30] sm:$0xf]
    %v58 = vld [vmem:[%s2 + $0x34] sm:$0xf]
    %v59 = vld [vmem:[%s2 + $0x38] sm:$0xf]
    %v60 = vld [vmem:[%s2 + $0x3c] sm:$0xf]
    %v61 = vld [vmem:[%s0] sm:$0xf]
    %v62 = vld [vmem:[%s0 + $0x4] sm:$0x3]
    %v79 = vunpack.c.l.b16 %v45
    %v80 = vunpack.c.l.b16 %v46
    %v81 = vunpack.c.l.b16 %v47
    %v82 = vunpack.c.l.b16 %v48
    %v83 = vunpack.c.l.b16 %v49
    %v84 = vunpack.c.l.b16 %v50
    %v85 = vunpack.c.l.b16 %v51
    %v86 = vunpack.c.l.b16 %v52
    %v87 = vunpack.c.l.b16 %v53
    %v88 = vunpack.c.l.b16 %v54
    %v89 = vunpack.c.l.b16 %v55
    %v90 = vunpack.c.l.b16 %v56
    %v91 = vunpack.c.l.b16 %v57
    %v92 = vunpack.c.l.b16 %v58
    %v93 = vunpack.c.l.b16 %v59
    %v94 = vunpack.c.l.b16 %v60
    %v95 = vpack.c.b16 %v80, %v79
    %v96 = vpack.c.b16 %v82, %v81
    %v97 = vpack.c.b16 %v84, %v83
    %v98 = vpack.c.b16 %v86, %v85
    %v99 = vpack.c.b16 %v88, %v87
    %v100 = vpack.c.b16 %v90, %v89
    %v101 = vpack.c.b16 %v92, %v91
    %v102 = vpack.c.b16 %v94, %v93
    %v105 = vunpack.c.l.b16 %v61
    %v106 = vunpack.c.l.b16 %v62
    %v107 = vpack.c.b16 %v106, %v105
    %vm108 = vcmask 97280
    %v110 = vsel %vm108, %v95, 0
    %v113 = vsel %vm108, %v96, 0
    %v116 = vsel %vm108, %v97, 0
    %v119 = vsel %vm108, %v98, 0
    %v122 = vsel %vm108, %v99, 0
    %v125 = vsel %vm108, %v100, 0
    %v128 = vsel %vm108, %v101, 0
    %v131 = vsel %vm108, %v102, 0
    %vm133 = vcmask 1045504
    %v135 = vsel %vm133, %v107, 0
    %137 = vmatpush.bf16.msra.mxu0 0
    %138 = vmatpush.bf16.msra.mxu0 0
    %139 = vmatpush.bf16.msra.mxu0 0
    %140 = vmatpush.bf16.msra.mxu0 0
    %141 = vmatpush.bf16.msra.mxu0 0
    %142 = vmatpush.bf16.msra.mxu0 0
    %143 = vmatpush.bf16.msra.mxu0 0
    %144 = vmatpush.bf16.msra.mxu0 %v135
    %145 = vmatmul.bf16.gmra.mxu0 %v110
    %v146 = vpop.f32.mrf.mxu0
    %v147 = vadd.f32 0.0, %v146
    %v148 = vpop.f32.mrf.mxu0
    %v149 = vadd.f32 0.0, %v148
    %150 = vmatmul.bf16.gmra.mxu0 %v113
    %v151 = vpop.f32.mrf.mxu0
    %v152 = vadd.f32 0.0, %v151
    %v153 = vpop.f32.mrf.mxu0
    %v154 = vadd.f32 0.0, %v153
    %155 = vmatmul.bf16.gmra.mxu0 %v116
    %v156 = vpop.f32.mrf.mxu0
    %v157 = vadd.f32 0.0, %v156
    %v158 = vpop.f32.mrf.mxu0
    %v159 = vadd.f32 0.0, %v158
    %160 = vmatmul.bf16.gmra.mxu0 %v119
    %v161 = vpop.f32.mrf.mxu0
    %v162 = vadd.f32 0.0, %v161
    %v163 = vpop.f32.mrf.mxu0
    %v164 = vadd.f32 0.0, %v163
    %165 = vmatmul.bf16.gmra.mxu0 %v122
    %v166 = vpop.f32.mrf.mxu0
    %v167 = vadd.f32 0.0, %v166
    %v168 = vpop.f32.mrf.mxu0
    %v169 = vadd.f32 0.0, %v168
    %170 = vmatmul.bf16.gmra.mxu0 %v125
    %v171 = vpop.f32.mrf.mxu0
    %v172 = vadd.f32 0.0, %v171
    %v173 = vpop.f32.mrf.mxu0
    %v174 = vadd.f32 0.0, %v173
    %175 = vmatmul.bf16.gmra.mxu0 %v128
    %v176 = vpop.f32.mrf.mxu0
    %v177 = vadd.f32 0.0, %v176
    %v178 = vpop.f32.mrf.mxu0
    %v179 = vadd.f32 0.0, %v178
    %180 = vmatmul.bf16.gmra.mxu0 %v131
    %v181 = vpop.f32.mrf.mxu0
    %v182 = vadd.f32 0.0, %v181
    %v183 = vpop.f32.mrf.mxu0
    %v184 = vadd.f32 0.0, %v183
    %185 = vdwg.mxu0
    %v186 = vld [vmem:[%s3] sm:$0xf]
    %v187 = vld [vmem:[%s3 + $0x4] sm:$0xf]
    %v188 = vld [vmem:[%s3 + $0x8] sm:$0xf]
    %v189 = vld [vmem:[%s3 + $0xc] sm:$0xf]
    %v190 = vld [vmem:[%s3 + $0x10] sm:$0xf]
    %v191 = vld [vmem:[%s3 + $0x14] sm:$0xf]
    %v192 = vld [vmem:[%s3 + $0x18] sm:$0xf]
    %v193 = vld [vmem:[%s3 + $0x1c] sm:$0xf]
    %v194 = vld [vmem:[%s3 + $0x20] sm:$0xf]
    %v195 = vld [vmem:[%s3 + $0x24] sm:$0xf]
    %v196 = vld [vmem:[%s3 + $0x28] sm:$0xf]
    %v197 = vld [vmem:[%s3 + $0x2c] sm:$0xf]
    %v198 = vld [vmem:[%s3 + $0x30] sm:$0xf]
    %v199 = vld [vmem:[%s3 + $0x34] sm:$0xf]
    %v200 = vld [vmem:[%s3 + $0x38] sm:$0xf]
    %v201 = vld [vmem:[%s3 + $0x3c] sm:$0xf]
    %v202 = vld [vmem:[%s1] sm:$0x7]
    %v219 = vunpack.c.l.b16 %v186
    %v220 = vunpack.c.l.b16 %v187
    %v221 = vunpack.c.l.b16 %v188
    %v222 = vunpack.c.l.b16 %v189
    %v223 = vunpack.c.l.b16 %v190
    %v224 = vunpack.c.l.b16 %v191
    %v225 = vunpack.c.l.b16 %v192
    %v226 = vunpack.c.l.b16 %v193
    %v227 = vunpack.c.l.b16 %v194
    %v228 = vunpack.c.l.b16 %v195
    %v229 = vunpack.c.l.b16 %v196
    %v230 = vunpack.c.l.b16 %v197
    %v231 = vunpack.c.l.b16 %v198
    %v232 = vunpack.c.l.b16 %v199
    %v233 = vunpack.c.l.b16 %v200
    %v234 = vunpack.c.l.b16 %v201
    %v235 = vpack.c.b16 %v220, %v219
    %v236 = vpack.c.b16 %v222, %v221
    %v237 = vpack.c.b16 %v224, %v223
    %v238 = vpack.c.b16 %v226, %v225
    %v239 = vpack.c.b16 %v228, %v227
    %v240 = vpack.c.b16 %v230, %v229
    %v241 = vpack.c.b16 %v232, %v231
    %v242 = vpack.c.b16 %v234, %v233
    %vm243 = vcmask 39936
    %v245 = vsel %vm243, %v235, 0
    %v248 = vsel %vm243, %v236, 0
    %v251 = vsel %vm243, %v237, 0
    %v254 = vsel %vm243, %v238, 0
    %v257 = vsel %vm243, %v239, 0
    %v260 = vsel %vm243, %v240, 0
    %v263 = vsel %vm243, %v241, 0
    %v266 = vsel %vm243, %v242, 0
    %vm268 = vcmask 1041408
    %vm269 = vcmask 1042432
    %v270 = vsel %vm268, 4294967295, 65535
    %v271 = vsel %vm269, %v270, 0
    %v273 = vand.u32 %v202, %v271
    %275 = vmatpush.bf16.msra.mxu0 0
    %276 = vmatpush.bf16.msra.mxu0 0
    %277 = vmatpush.bf16.msra.mxu0 0
    %278 = vmatpush.bf16.msra.mxu0 0
    %279 = vmatpush.bf16.msra.mxu0 0
    %280 = vmatpush.bf16.msra.mxu0 0
    %281 = vmatpush.bf16.msra.mxu0 0
    %282 = vmatpush.bf16.msra.mxu0 %v273
    %283 = vmatmul.bf16.gmra.mxu0 %v245
    %v284 = vpop.f32.mrf.mxu0
    %v285 = vadd.f32 0.0, %v284
    %v286 = vpop.f32.mrf.mxu0
    %v287 = vadd.f32 0.0, %v286
    %288 = vmatmul.bf16.gmra.mxu0 %v248
    %v289 = vpop.f32.mrf.mxu0
    %v290 = vadd.f32 0.0, %v289
    %v291 = vpop.f32.mrf.mxu0
    %v292 = vadd.f32 0.0, %v291
    %293 = vmatmul.bf16.gmra.mxu0 %v251
    %v294 = vpop.f32.mrf.mxu0
    %v295 = vadd.f32 0.0, %v294
    %v296 = vpop.f32.mrf.mxu0
    %v297 = vadd.f32 0.0, %v296
    %298 = vmatmul.bf16.gmra.mxu0 %v254
    %v299 = vpop.f32.mrf.mxu0
    %v300 = vadd.f32 0.0, %v299
    %v301 = vpop.f32.mrf.mxu0
    %v302 = vadd.f32 0.0, %v301
    %303 = vmatmul.bf16.gmra.mxu0 %v257
    %v304 = vpop.f32.mrf.mxu0
    %v305 = vadd.f32 0.0, %v304
    %v306 = vpop.f32.mrf.mxu0
    %v307 = vadd.f32 0.0, %v306
    %308 = vmatmul.bf16.gmra.mxu0 %v260
    %v309 = vpop.f32.mrf.mxu0
    %v310 = vadd.f32 0.0, %v309
    %v311 = vpop.f32.mrf.mxu0
    %v312 = vadd.f32 0.0, %v311
    %313 = vmatmul.bf16.gmra.mxu0 %v263
    %v314 = vpop.f32.mrf.mxu0
    %v315 = vadd.f32 0.0, %v314
    %v316 = vpop.f32.mrf.mxu0
    %v317 = vadd.f32 0.0, %v316
    %318 = vmatmul.bf16.gmra.mxu0 %v266
    %v319 = vpop.f32.mrf.mxu0
    %v320 = vadd.f32 0.0, %v319
    %v321 = vpop.f32.mrf.mxu0
    %v322 = vadd.f32 0.0, %v321
    %323 = vdwg.mxu0
    %v324 = vadd.f32 %v147, %v285
    %v325 = vadd.f32 %v149, %v287
    %v326 = vadd.f32 %v152, %v290
    %v327 = vadd.f32 %v154, %v292
    %v328 = vadd.f32 %v157, %v295
    %v329 = vadd.f32 %v159, %v297
    %v330 = vadd.f32 %v162, %v300
    %v331 = vadd.f32 %v164, %v302
    %v332 = vadd.f32 %v167, %v305
    %v333 = vadd.f32 %v169, %v307
    %v334 = vadd.f32 %v172, %v310
    %v335 = vadd.f32 %v174, %v312
    %v336 = vadd.f32 %v177, %v315
    %v337 = vadd.f32 %v179, %v317
    %v338 = vadd.f32 %v182, %v320
    %v339 = vadd.f32 %v184, %v322
    %341 = vset.pattern.permute.xlu0 0
    %342 = vperm.xlu0 %341, %v29
    %v343 = vpop.permute.xlu0 %342
    %346 = vset.pattern.permute.xlu0 0
    %347 = vperm.xlu0 %346, %v30
    %v348 = vpop.permute.xlu0 %347
    %351 = vset.pattern.permute.xlu0 0
    %352 = vperm.xlu0 %351, %v31
    %v353 = vpop.permute.xlu0 %352
    %356 = vset.pattern.permute.xlu0 0
    %357 = vperm.xlu0 %356, %v32
    %v358 = vpop.permute.xlu0 %357
    %361 = vset.pattern.permute.xlu0 0
    %362 = vperm.xlu0 %361, %v33
    %v363 = vpop.permute.xlu0 %362
    %366 = vset.pattern.permute.xlu0 0
    %367 = vperm.xlu0 %366, %v34
    %v368 = vpop.permute.xlu0 %367
    %371 = vset.pattern.permute.xlu0 0
    %372 = vperm.xlu0 %371, %v35
    %v373 = vpop.permute.xlu0 %372
    %376 = vset.pattern.permute.xlu0 0
    %377 = vperm.xlu0 %376, %v36
    %v378 = vpop.permute.xlu0 %377
    %381 = vset.pattern.permute.xlu0 0
    %382 = vperm.xlu0 %381, %v37
    %v383 = vpop.permute.xlu0 %382
    %386 = vset.pattern.permute.xlu0 0
    %387 = vperm.xlu0 %386, %v38
    %v388 = vpop.permute.xlu0 %387
    %391 = vset.pattern.permute.xlu0 0
    %392 = vperm.xlu0 %391, %v39
    %v393 = vpop.permute.xlu0 %392
    %396 = vset.pattern.permute.xlu0 0
    %397 = vperm.xlu0 %396, %v40
    %v398 = vpop.permute.xlu0 %397
    %401 = vset.pattern.permute.xlu0 0
    %402 = vperm.xlu0 %401, %v41
    %v403 = vpop.permute.xlu0 %402
    %406 = vset.pattern.permute.xlu0 0
    %407 = vperm.xlu0 %406, %v42
    %v408 = vpop.permute.xlu0 %407
    %411 = vset.pattern.permute.xlu0 0
    %412 = vperm.xlu0 %411, %v43
    %v413 = vpop.permute.xlu0 %412
    %416 = vset.pattern.permute.xlu0 0
    %417 = vperm.xlu0 %416, %v44
    %v418 = vpop.permute.xlu0 %417
    %v420 = vadd.f32 %v324, %v343
    %v421 = vadd.f32 %v325, %v348
    %v422 = vadd.f32 %v326, %v353
    %v423 = vadd.f32 %v327, %v358
    %v424 = vadd.f32 %v328, %v363
    %v425 = vadd.f32 %v329, %v368
    %v426 = vadd.f32 %v330, %v373
    %v427 = vadd.f32 %v331, %v378
    %v428 = vadd.f32 %v332, %v383
    %v429 = vadd.f32 %v333, %v388
    %v430 = vadd.f32 %v334, %v393
    %v431 = vadd.f32 %v335, %v398
    %v432 = vadd.f32 %v336, %v403
    %v433 = vadd.f32 %v337, %v408
    %v434 = vadd.f32 %v338, %v413
    %v435 = vadd.f32 %v339, %v418
    %v436 = vmax.f32 %v420, 0.0
    %v437 = vmax.f32 %v421, 0.0
    %v438 = vmax.f32 %v422, 0.0
    %v439 = vmax.f32 %v423, 0.0
    %v440 = vmax.f32 %v424, 0.0
    %v441 = vmax.f32 %v425, 0.0
    %v442 = vmax.f32 %v426, 0.0
    %v443 = vmax.f32 %v427, 0.0
    %v444 = vmax.f32 %v428, 0.0
    %v445 = vmax.f32 %v429, 0.0
    %v446 = vmax.f32 %v430, 0.0
    %v447 = vmax.f32 %v431, 0.0
    %v448 = vmax.f32 %v432, 0.0
    %v449 = vmax.f32 %v433, 0.0
    %v450 = vmax.f32 %v434, 0.0
    %v451 = vmax.f32 %v435, 0.0
    %s452 = scalar_lea.vmem %s1, 4
    %v453 = vld [vmem:[%s452] sm:$0x7]
    %v455 = vand.u32 %v453, %v271
    %457 = vmatpush.bf16.msra.mxu0 0
    %458 = vmatpush.bf16.msra.mxu0 0
    %459 = vmatpush.bf16.msra.mxu0 0
    %460 = vmatpush.bf16.msra.mxu0 0
    %461 = vmatpush.bf16.msra.mxu0 0
    %462 = vmatpush.bf16.msra.mxu0 0
    %463 = vmatpush.bf16.msra.mxu0 0
    %464 = vmatpush.bf16.msra.mxu0 %v455
    %465 = vmatmul.bf16.gmra.mxu0 %v245
    %v466 = vpop.f32.mrf.mxu0
    %v467 = vadd.f32 0.0, %v466
    %v468 = vpop.f32.mrf.mxu0
    %v469 = vadd.f32 0.0, %v468
    %470 = vmatmul.bf16.gmra.mxu0 %v248
    %v471 = vpop.f32.mrf.mxu0
    %v472 = vadd.f32 0.0, %v471
    %v473 = vpop.f32.mrf.mxu0
    %v474 = vadd.f32 0.0, %v473
    %475 = vmatmul.bf16.gmra.mxu0 %v251
    %v476 = vpop.f32.mrf.mxu0
    %v477 = vadd.f32 0.0, %v476
    %v478 = vpop.f32.mrf.mxu0
    %v479 = vadd.f32 0.0, %v478
    %480 = vmatmul.bf16.gmra.mxu0 %v254
    %v481 = vpop.f32.mrf.mxu0
    %v482 = vadd.f32 0.0, %v481
    %v483 = vpop.f32.mrf.mxu0
    %v484 = vadd.f32 0.0, %v483
    %485 = vmatmul.bf16.gmra.mxu0 %v257
    %v486 = vpop.f32.mrf.mxu0
    %v487 = vadd.f32 0.0, %v486
    %v488 = vpop.f32.mrf.mxu0
    %v489 = vadd.f32 0.0, %v488
    %490 = vmatmul.bf16.gmra.mxu0 %v260
    %v491 = vpop.f32.mrf.mxu0
    %v492 = vadd.f32 0.0, %v491
    %v493 = vpop.f32.mrf.mxu0
    %v494 = vadd.f32 0.0, %v493
    %495 = vmatmul.bf16.gmra.mxu0 %v263
    %v496 = vpop.f32.mrf.mxu0
    %v497 = vadd.f32 0.0, %v496
    %v498 = vpop.f32.mrf.mxu0
    %v499 = vadd.f32 0.0, %v498
    %500 = vmatmul.bf16.gmra.mxu0 %v266
    %v501 = vpop.f32.mrf.mxu0
    %v502 = vadd.f32 0.0, %v501
    %v503 = vpop.f32.mrf.mxu0
    %v504 = vadd.f32 0.0, %v503
    %505 = vdwg.mxu0
    %v506 = vadd.f32 %v147, %v467
    %v507 = vadd.f32 %v149, %v469
    %v508 = vadd.f32 %v152, %v472
    %v509 = vadd.f32 %v154, %v474
    %v510 = vadd.f32 %v157, %v477
    %v511 = vadd.f32 %v159, %v479
    %v512 = vadd.f32 %v162, %v482
    %v513 = vadd.f32 %v164, %v484
    %v514 = vadd.f32 %v167, %v487
    %v515 = vadd.f32 %v169, %v489
    %v516 = vadd.f32 %v172, %v492
    %v517 = vadd.f32 %v174, %v494
    %v518 = vadd.f32 %v177, %v497
    %v519 = vadd.f32 %v179, %v499
    %v520 = vadd.f32 %v182, %v502
    %v521 = vadd.f32 %v184, %v504
    %522 = vset.pattern.permute.xlu0 1
    %523 = vperm.xlu0 %522, %v29
    %v524 = vpop.permute.xlu0 %523
    %526 = vset.pattern.permute.xlu0 1
    %527 = vperm.xlu0 %526, %v30
    %v528 = vpop.permute.xlu0 %527
    %530 = vset.pattern.permute.xlu0 1
    %531 = vperm.xlu0 %530, %v31
    %v532 = vpop.permute.xlu0 %531
    %534 = vset.pattern.permute.xlu0 1
    %535 = vperm.xlu0 %534, %v32
    %v536 = vpop.permute.xlu0 %535
    %538 = vset.pattern.permute.xlu0 1
    %539 = vperm.xlu0 %538, %v33
    %v540 = vpop.permute.xlu0 %539
    %542 = vset.pattern.permute.xlu0 1
    %543 = vperm.xlu0 %542, %v34
    %v544 = vpop.permute.xlu0 %543
    %546 = vset.pattern.permute.xlu0 1
    %547 = vperm.xlu0 %546, %v35
    %v548 = vpop.permute.xlu0 %547
    %550 = vset.pattern.permute.xlu0 1
    %551 = vperm.xlu0 %550, %v36
    %v552 = vpop.permute.xlu0 %551
    %554 = vset.pattern.permute.xlu0 1
    %555 = vperm.xlu0 %554, %v37
    %v556 = vpop.permute.xlu0 %555
    %558 = vset.pattern.permute.xlu0 1
    %559 = vperm.xlu0 %558, %v38
    %v560 = vpop.permute.xlu0 %559
    %562 = vset.pattern.permute.xlu0 1
    %563 = vperm.xlu0 %562, %v39
    %v564 = vpop.permute.xlu0 %563
    %566 = vset.pattern.permute.xlu0 1
    %567 = vperm.xlu0 %566, %v40
    %v568 = vpop.permute.xlu0 %567
    %570 = vset.pattern.permute.xlu0 1
    %571 = vperm.xlu0 %570, %v41
    %v572 = vpop.permute.xlu0 %571
    %574 = vset.pattern.permute.xlu0 1
    %575 = vperm.xlu0 %574, %v42
    %v576 = vpop.permute.xlu0 %575
    %578 = vset.pattern.permute.xlu0 1
    %579 = vperm.xlu0 %578, %v43
    %v580 = vpop.permute.xlu0 %579
    %582 = vset.pattern.permute.xlu0 1
    %583 = vperm.xlu0 %582, %v44
    %v584 = vpop.permute.xlu0 %583
    %v586 = vadd.f32 %v506, %v524
    %v587 = vadd.f32 %v507, %v528
    %v588 = vadd.f32 %v508, %v532
    %v589 = vadd.f32 %v509, %v536
    %v590 = vadd.f32 %v510, %v540
    %v591 = vadd.f32 %v511, %v544
    %v592 = vadd.f32 %v512, %v548
    %v593 = vadd.f32 %v513, %v552
    %v594 = vadd.f32 %v514, %v556
    %v595 = vadd.f32 %v515, %v560
    %v596 = vadd.f32 %v516, %v564
    %v597 = vadd.f32 %v517, %v568
    %v598 = vadd.f32 %v518, %v572
    %v599 = vadd.f32 %v519, %v576
    %v600 = vadd.f32 %v520, %v580
    %v601 = vadd.f32 %v521, %v584
    %v602 = vmax.f32 %v586, 0.0
    %v603 = vmax.f32 %v587, 0.0
    %v604 = vmax.f32 %v588, 0.0
    %v605 = vmax.f32 %v589, 0.0
    %v606 = vmax.f32 %v590, 0.0
    %v607 = vmax.f32 %v591, 0.0
    %v608 = vmax.f32 %v592, 0.0
    %v609 = vmax.f32 %v593, 0.0
    %v610 = vmax.f32 %v594, 0.0
    %v611 = vmax.f32 %v595, 0.0
    %v612 = vmax.f32 %v596, 0.0
    %v613 = vmax.f32 %v597, 0.0
    %v614 = vmax.f32 %v598, 0.0
    %v615 = vmax.f32 %v599, 0.0
    %v616 = vmax.f32 %v600, 0.0
    %v617 = vmax.f32 %v601, 0.0
    %s618 = scalar_lea.vmem %s1, 8
    %v619 = vld [vmem:[%s618] sm:$0x7]
    %v621 = vand.u32 %v619, %v271
    %623 = vmatpush.bf16.msra.mxu0 0
    %624 = vmatpush.bf16.msra.mxu0 0
    %625 = vmatpush.bf16.msra.mxu0 0
    %626 = vmatpush.bf16.msra.mxu0 0
    %627 = vmatpush.bf16.msra.mxu0 0
    %628 = vmatpush.bf16.msra.mxu0 0
    %629 = vmatpush.bf16.msra.mxu0 0
    %630 = vmatpush.bf16.msra.mxu0 %v621
    %631 = vmatmul.bf16.gmra.mxu0 %v245
    %v632 = vpop.f32.mrf.mxu0
    %v633 = vadd.f32 0.0, %v632
    %v634 = vpop.f32.mrf.mxu0
    %v635 = vadd.f32 0.0, %v634
    %636 = vmatmul.bf16.gmra.mxu0 %v248
    %v637 = vpop.f32.mrf.mxu0
    %v638 = vadd.f32 0.0, %v637
    %v639 = vpop.f32.mrf.mxu0
    %v640 = vadd.f32 0.0, %v639
    %641 = vmatmul.bf16.gmra.mxu0 %v251
    %v642 = vpop.f32.mrf.mxu0
    %v643 = vadd.f32 0.0, %v642
    %v644 = vpop.f32.mrf.mxu0
    %v645 = vadd.f32 0.0, %v644
    %646 = vmatmul.bf16.gmra.mxu0 %v254
    %v647 = vpop.f32.mrf.mxu0
    %v648 = vadd.f32 0.0, %v647
    %v649 = vpop.f32.mrf.mxu0
    %v650 = vadd.f32 0.0, %v649
    %651 = vmatmul.bf16.gmra.mxu0 %v257
    %v652 = vpop.f32.mrf.mxu0
    %v653 = vadd.f32 0.0, %v652
    %v654 = vpop.f32.mrf.mxu0
    %v655 = vadd.f32 0.0, %v654
    %656 = vmatmul.bf16.gmra.mxu0 %v260
    %v657 = vpop.f32.mrf.mxu0
    %v658 = vadd.f32 0.0, %v657
    %v659 = vpop.f32.mrf.mxu0
    %v660 = vadd.f32 0.0, %v659
    %661 = vmatmul.bf16.gmra.mxu0 %v263
    %v662 = vpop.f32.mrf.mxu0
    %v663 = vadd.f32 0.0, %v662
    %v664 = vpop.f32.mrf.mxu0
    %v665 = vadd.f32 0.0, %v664
    %666 = vmatmul.bf16.gmra.mxu0 %v266
    %v667 = vpop.f32.mrf.mxu0
    %v668 = vadd.f32 0.0, %v667
    %v669 = vpop.f32.mrf.mxu0
    %v670 = vadd.f32 0.0, %v669
    %671 = vdwg.mxu0
    %v672 = vadd.f32 %v147, %v633
    %v673 = vadd.f32 %v149, %v635
    %v674 = vadd.f32 %v152, %v638
    %v675 = vadd.f32 %v154, %v640
    %v676 = vadd.f32 %v157, %v643
    %v677 = vadd.f32 %v159, %v645
    %v678 = vadd.f32 %v162, %v648
    %v679 = vadd.f32 %v164, %v650
    %v680 = vadd.f32 %v167, %v653
    %v681 = vadd.f32 %v169, %v655
    %v682 = vadd.f32 %v172, %v658
    %v683 = vadd.f32 %v174, %v660
    %v684 = vadd.f32 %v177, %v663
    %v685 = vadd.f32 %v179, %v665
    %v686 = vadd.f32 %v182, %v668
    %v687 = vadd.f32 %v184, %v670
    %688 = vset.pattern.permute.xlu0 2
    %689 = vperm.xlu0 %688, %v29
    %v690 = vpop.permute.xlu0 %689
    %692 = vset.pattern.permute.xlu0 2
    %693 = vperm.xlu0 %692, %v30
    %v694 = vpop.permute.xlu0 %693
    %696 = vset.pattern.permute.xlu0 2
    %697 = vperm.xlu0 %696, %v31
    %v698 = vpop.permute.xlu0 %697
    %700 = vset.pattern.permute.xlu0 2
    %701 = vperm.xlu0 %700, %v32
    %v702 = vpop.permute.xlu0 %701
    %704 = vset.pattern.permute.xlu0 2
    %705 = vperm.xlu0 %704, %v33
    %v706 = vpop.permute.xlu0 %705
    %708 = vset.pattern.permute.xlu0 2
    %709 = vperm.xlu0 %708, %v34
    %v710 = vpop.permute.xlu0 %709
    %712 = vset.pattern.permute.xlu0 2
    %713 = vperm.xlu0 %712, %v35
    %v714 = vpop.permute.xlu0 %713
    %716 = vset.pattern.permute.xlu0 2
    %717 = vperm.xlu0 %716, %v36
    %v718 = vpop.permute.xlu0 %717
    %720 = vset.pattern.permute.xlu0 2
    %721 = vperm.xlu0 %720, %v37
    %v722 = vpop.permute.xlu0 %721
    %724 = vset.pattern.permute.xlu0 2
    %725 = vperm.xlu0 %724, %v38
    %v726 = vpop.permute.xlu0 %725
    %728 = vset.pattern.permute.xlu0 2
    %729 = vperm.xlu0 %728, %v39
    %v730 = vpop.permute.xlu0 %729
    %732 = vset.pattern.permute.xlu0 2
    %733 = vperm.xlu0 %732, %v40
    %v734 = vpop.permute.xlu0 %733
    %736 = vset.pattern.permute.xlu0 2
    %737 = vperm.xlu0 %736, %v41
    %v738 = vpop.permute.xlu0 %737
    %740 = vset.pattern.permute.xlu0 2
    %741 = vperm.xlu0 %740, %v42
    %v742 = vpop.permute.xlu0 %741
    %744 = vset.pattern.permute.xlu0 2
    %745 = vperm.xlu0 %744, %v43
    %v746 = vpop.permute.xlu0 %745
    %748 = vset.pattern.permute.xlu0 2
    %749 = vperm.xlu0 %748, %v44
    %v750 = vpop.permute.xlu0 %749
    %v752 = vadd.f32 %v672, %v690
    %v753 = vadd.f32 %v673, %v694
    %v754 = vadd.f32 %v674, %v698
    %v755 = vadd.f32 %v675, %v702
    %v756 = vadd.f32 %v676, %v706
    %v757 = vadd.f32 %v677, %v710
    %v758 = vadd.f32 %v678, %v714
    %v759 = vadd.f32 %v679, %v718
    %v760 = vadd.f32 %v680, %v722
    %v761 = vadd.f32 %v681, %v726
    %v762 = vadd.f32 %v682, %v730
    %v763 = vadd.f32 %v683, %v734
    %v764 = vadd.f32 %v684, %v738
    %v765 = vadd.f32 %v685, %v742
    %v766 = vadd.f32 %v686, %v746
    %v767 = vadd.f32 %v687, %v750
    %v768 = vmax.f32 %v752, 0.0
    %v769 = vmax.f32 %v753, 0.0
    %v770 = vmax.f32 %v754, 0.0
    %v771 = vmax.f32 %v755, 0.0
    %v772 = vmax.f32 %v756, 0.0
    %v773 = vmax.f32 %v757, 0.0
    %v774 = vmax.f32 %v758, 0.0
    %v775 = vmax.f32 %v759, 0.0
    %v776 = vmax.f32 %v760, 0.0
    %v777 = vmax.f32 %v761, 0.0
    %v778 = vmax.f32 %v762, 0.0
    %v779 = vmax.f32 %v763, 0.0
    %v780 = vmax.f32 %v764, 0.0
    %v781 = vmax.f32 %v765, 0.0
    %v782 = vmax.f32 %v766, 0.0
    %v783 = vmax.f32 %v767, 0.0
    %s784 = scalar_lea.vmem %s1, 12
    %v785 = vld [vmem:[%s784] sm:$0x7]
    %v787 = vand.u32 %v785, %v271
    %789 = vmatpush.bf16.msra.mxu0 0
    %790 = vmatpush.bf16.msra.mxu0 0
    %791 = vmatpush.bf16.msra.mxu0 0
    %792 = vmatpush.bf16.msra.mxu0 0
    %793 = vmatpush.bf16.msra.mxu0 0
    %794 = vmatpush.bf16.msra.mxu0 0
    %795 = vmatpush.bf16.msra.mxu0 0
    %796 = vmatpush.bf16.msra.mxu0 %v787
    %797 = vmatmul.bf16.gmra.mxu0 %v245
    %v798 = vpop.f32.mrf.mxu0
    %v799 = vadd.f32 0.0, %v798
    %v800 = vpop.f32.mrf.mxu0
    %v801 = vadd.f32 0.0, %v800
    %802 = vmatmul.bf16.gmra.mxu0 %v248
    %v803 = vpop.f32.mrf.mxu0
    %v804 = vadd.f32 0.0, %v803
    %v805 = vpop.f32.mrf.mxu0
    %v806 = vadd.f32 0.0, %v805
    %807 = vmatmul.bf16.gmra.mxu0 %v251
    %v808 = vpop.f32.mrf.mxu0
    %v809 = vadd.f32 0.0, %v808
    %v810 = vpop.f32.mrf.mxu0
    %v811 = vadd.f32 0.0, %v810
    %812 = vmatmul.bf16.gmra.mxu0 %v254
    %v813 = vpop.f32.mrf.mxu0
    %v814 = vadd.f32 0.0, %v813
    %v815 = vpop.f32.mrf.mxu0
    %v816 = vadd.f32 0.0, %v815
    %817 = vmatmul.bf16.gmra.mxu0 %v257
    %v818 = vpop.f32.mrf.mxu0
    %v819 = vadd.f32 0.0, %v818
    %v820 = vpop.f32.mrf.mxu0
    %v821 = vadd.f32 0.0, %v820
    %822 = vmatmul.bf16.gmra.mxu0 %v260
    %v823 = vpop.f32.mrf.mxu0
    %v824 = vadd.f32 0.0, %v823
    %v825 = vpop.f32.mrf.mxu0
    %v826 = vadd.f32 0.0, %v825
    %827 = vmatmul.bf16.gmra.mxu0 %v263
    %v828 = vpop.f32.mrf.mxu0
    %v829 = vadd.f32 0.0, %v828
    %v830 = vpop.f32.mrf.mxu0
    %v831 = vadd.f32 0.0, %v830
    %832 = vmatmul.bf16.gmra.mxu0 %v266
    %v833 = vpop.f32.mrf.mxu0
    %v834 = vadd.f32 0.0, %v833
    %v835 = vpop.f32.mrf.mxu0
    %v836 = vadd.f32 0.0, %v835
    %837 = vdwg.mxu0
    %v838 = vadd.f32 %v147, %v799
    %v839 = vadd.f32 %v149, %v801
    %v840 = vadd.f32 %v152, %v804
    %v841 = vadd.f32 %v154, %v806
    %v842 = vadd.f32 %v157, %v809
    %v843 = vadd.f32 %v159, %v811
    %v844 = vadd.f32 %v162, %v814
    %v845 = vadd.f32 %v164, %v816
    %v846 = vadd.f32 %v167, %v819
    %v847 = vadd.f32 %v169, %v821
    %v848 = vadd.f32 %v172, %v824
    %v849 = vadd.f32 %v174, %v826
    %v850 = vadd.f32 %v177, %v829
    %v851 = vadd.f32 %v179, %v831
    %v852 = vadd.f32 %v182, %v834
    %v853 = vadd.f32 %v184, %v836
    %854 = vset.pattern.permute.xlu0 3
    %855 = vperm.xlu0 %854, %v29
    %v856 = vpop.permute.xlu0 %855
    %858 = vset.pattern.permute.xlu0 3
    %859 = vperm.xlu0 %858, %v30
    %v860 = vpop.permute.xlu0 %859
    %862 = vset.pattern.permute.xlu0 3
    %863 = vperm.xlu0 %862, %v31
    %v864 = vpop.permute.xlu0 %863
    %866 = vset.pattern.permute.xlu0 3
    %867 = vperm.xlu0 %866, %v32
    %v868 = vpop.permute.xlu0 %867
    %870 = vset.pattern.permute.xlu0 3
    %871 = vperm.xlu0 %870, %v33
    %v872 = vpop.permute.xlu0 %871
    %874 = vset.pattern.permute.xlu0 3
    %875 = vperm.xlu0 %874, %v34
    %v876 = vpop.permute.xlu0 %875
    %878 = vset.pattern.permute.xlu0 3
    %879 = vperm.xlu0 %878, %v35
    %v880 = vpop.permute.xlu0 %879
    %882 = vset.pattern.permute.xlu0 3
    %883 = vperm.xlu0 %882, %v36
    %v884 = vpop.permute.xlu0 %883
    %886 = vset.pattern.permute.xlu0 3
    %887 = vperm.xlu0 %886, %v37
    %v888 = vpop.permute.xlu0 %887
    %890 = vset.pattern.permute.xlu0 3
    %891 = vperm.xlu0 %890, %v38
    %v892 = vpop.permute.xlu0 %891
    %894 = vset.pattern.permute.xlu0 3
    %895 = vperm.xlu0 %894, %v39
    %v896 = vpop.permute.xlu0 %895
    %898 = vset.pattern.permute.xlu0 3
    %899 = vperm.xlu0 %898, %v40
    %v900 = vpop.permute.xlu0 %899
    %902 = vset.pattern.permute.xlu0 3
    %903 = vperm.xlu0 %902, %v41
    %v904 = vpop.permute.xlu0 %903
    %906 = vset.pattern.permute.xlu0 3
    %907 = vperm.xlu0 %906, %v42
    %v908 = vpop.permute.xlu0 %907
    %910 = vset.pattern.permute.xlu0 3
    %911 = vperm.xlu0 %910, %v43
    %v912 = vpop.permute.xlu0 %911
    %914 = vset.pattern.permute.xlu0 3
    %915 = vperm.xlu0 %914, %v44
    %v916 = vpop.permute.xlu0 %915
    %v918 = vadd.f32 %v838, %v856
    %v919 = vadd.f32 %v839, %v860
    %v920 = vadd.f32 %v840, %v864
    %v921 = vadd.f32 %v841, %v868
    %v922 = vadd.f32 %v842, %v872
    %v923 = vadd.f32 %v843, %v876
    %v924 = vadd.f32 %v844, %v880
    %v925 = vadd.f32 %v845, %v884
    %v926 = vadd.f32 %v846, %v888
    %v927 = vadd.f32 %v847, %v892
    %v928 = vadd.f32 %v848, %v896
    %v929 = vadd.f32 %v849, %v900
    %v930 = vadd.f32 %v850, %v904
    %v931 = vadd.f32 %v851, %v908
    %v932 = vadd.f32 %v852, %v912
    %v933 = vadd.f32 %v853, %v916
    %v934 = vmax.f32 %v918, 0.0
    %v935 = vmax.f32 %v919, 0.0
    %v936 = vmax.f32 %v920, 0.0
    %v937 = vmax.f32 %v921, 0.0
    %v938 = vmax.f32 %v922, 0.0
    %v939 = vmax.f32 %v923, 0.0
    %v940 = vmax.f32 %v924, 0.0
    %v941 = vmax.f32 %v925, 0.0
    %v942 = vmax.f32 %v926, 0.0
    %v943 = vmax.f32 %v927, 0.0
    %v944 = vmax.f32 %v928, 0.0
    %v945 = vmax.f32 %v929, 0.0
    %v946 = vmax.f32 %v930, 0.0
    %v947 = vmax.f32 %v931, 0.0
    %v948 = vmax.f32 %v932, 0.0
    %v949 = vmax.f32 %v933, 0.0
    %v950 = vpack.c.bf16 %v437, %v436
    %v951 = vpack.c.bf16 %v603, %v602
    %v952 = vpack.c.bf16 %v769, %v768
    %v953 = vpack.c.bf16 %v935, %v934
    %v954 = vpack.c.bf16 %v439, %v438
    %v955 = vpack.c.bf16 %v605, %v604
    %v956 = vpack.c.bf16 %v771, %v770
    %v957 = vpack.c.bf16 %v937, %v936
    %v958 = vpack.c.bf16 %v441, %v440
    %v959 = vpack.c.bf16 %v607, %v606
    %v960 = vpack.c.bf16 %v773, %v772
    %v961 = vpack.c.bf16 %v939, %v938
    %v962 = vpack.c.bf16 %v443, %v442
    %v963 = vpack.c.bf16 %v609, %v608
    %v964 = vpack.c.bf16 %v775, %v774
    %v965 = vpack.c.bf16 %v941, %v940
    %v966 = vpack.c.bf16 %v445, %v444
    %v967 = vpack.c.bf16 %v611, %v610
    %v968 = vpack.c.bf16 %v777, %v776
    %v969 = vpack.c.bf16 %v943, %v942
    %v970 = vpack.c.bf16 %v447, %v446
    %v971 = vpack.c.bf16 %v613, %v612
    %v972 = vpack.c.bf16 %v779, %v778
    %v973 = vpack.c.bf16 %v945, %v944
    %v974 = vpack.c.bf16 %v449, %v448
    %v975 = vpack.c.bf16 %v615, %v614
    %v976 = vpack.c.bf16 %v781, %v780
    %v977 = vpack.c.bf16 %v947, %v946
    %v978 = vpack.c.bf16 %v451, %v450
    %v979 = vpack.c.bf16 %v617, %v616
    %v980 = vpack.c.bf16 %v783, %v782
    %v981 = vpack.c.bf16 %v949, %v948
    %v982 = vld [vmem:[%s4] sm:$0xf]
    %v983 = vld [vmem:[%s4 + $0x4] sm:$0xf]
    %v984 = vld [vmem:[%s4 + $0x8] sm:$0xf]
    %v985 = vld [vmem:[%s4 + $0xc] sm:$0xf]
    %v986 = vld [vmem:[%s4 + $0x10] sm:$0xf]
    %v987 = vld [vmem:[%s4 + $0x14] sm:$0xf]
    %v988 = vld [vmem:[%s4 + $0x18] sm:$0xf]
    %v989 = vld [vmem:[%s4 + $0x1c] sm:$0xf]
    %v990 = vld [vmem:[%s4 + $0x20] sm:$0xf]
    %v991 = vld [vmem:[%s4 + $0x24] sm:$0xf]
    %v992 = vld [vmem:[%s4 + $0x28] sm:$0xf]
    %v993 = vld [vmem:[%s4 + $0x2c] sm:$0xf]
    %v994 = vld [vmem:[%s4 + $0x30] sm:$0xf]
    %v995 = vld [vmem:[%s4 + $0x34] sm:$0xf]
    %v996 = vld [vmem:[%s4 + $0x38] sm:$0xf]
    %v997 = vld [vmem:[%s4 + $0x3c] sm:$0xf]
    %998 = vset.pattern.permute.xlu0 4
    %999 = vperm.xlu0 %998, %v29
    %v1000 = vpop.permute.xlu0 %999
    %1002 = vset.pattern.permute.xlu0 4
    %1003 = vperm.xlu0 %1002, %v30
    %v1004 = vpop.permute.xlu0 %1003
    %1006 = vset.pattern.permute.xlu0 4
    %1007 = vperm.xlu0 %1006, %v31
    %v1008 = vpop.permute.xlu0 %1007
    %1010 = vset.pattern.permute.xlu0 4
    %1011 = vperm.xlu0 %1010, %v32
    %v1012 = vpop.permute.xlu0 %1011
    %1014 = vset.pattern.permute.xlu0 4
    %1015 = vperm.xlu0 %1014, %v33
    %v1016 = vpop.permute.xlu0 %1015
    %1018 = vset.pattern.permute.xlu0 4
    %1019 = vperm.xlu0 %1018, %v34
    %v1020 = vpop.permute.xlu0 %1019
    %1022 = vset.pattern.permute.xlu0 4
    %1023 = vperm.xlu0 %1022, %v35
    %v1024 = vpop.permute.xlu0 %1023
    %1026 = vset.pattern.permute.xlu0 4
    %1027 = vperm.xlu0 %1026, %v36
    %v1028 = vpop.permute.xlu0 %1027
    %1030 = vset.pattern.permute.xlu0 4
    %1031 = vperm.xlu0 %1030, %v37
    %v1032 = vpop.permute.xlu0 %1031
    %1034 = vset.pattern.permute.xlu0 4
    %1035 = vperm.xlu0 %1034, %v38
    %v1036 = vpop.permute.xlu0 %1035
    %1038 = vset.pattern.permute.xlu0 4
    %1039 = vperm.xlu0 %1038, %v39
    %v1040 = vpop.permute.xlu0 %1039
    %1042 = vset.pattern.permute.xlu0 4
    %1043 = vperm.xlu0 %1042, %v40
    %v1044 = vpop.permute.xlu0 %1043
    %1046 = vset.pattern.permute.xlu0 4
    %1047 = vperm.xlu0 %1046, %v41
    %v1048 = vpop.permute.xlu0 %1047
    %1050 = vset.pattern.permute.xlu0 4
    %1051 = vperm.xlu0 %1050, %v42
    %v1052 = vpop.permute.xlu0 %1051
    %1054 = vset.pattern.permute.xlu0 4
    %1055 = vperm.xlu0 %1054, %v43
    %v1056 = vpop.permute.xlu0 %1055
    %1058 = vset.pattern.permute.xlu0 4
    %1059 = vperm.xlu0 %1058, %v44
    %v1060 = vpop.permute.xlu0 %1059
    %v1078 = vunpack.c.l.b16 %v982
    %v1079 = vunpack.c.l.b16 %v983
    %v1080 = vunpack.c.l.b16 %v984
    %v1081 = vunpack.c.l.b16 %v985
    %v1082 = vunpack.c.l.b16 %v986
    %v1083 = vunpack.c.l.b16 %v987
    %v1084 = vunpack.c.l.b16 %v988
    %v1085 = vunpack.c.l.b16 %v989
    %v1086 = vunpack.c.l.b16 %v990
    %v1087 = vunpack.c.l.b16 %v991
    %v1088 = vunpack.c.l.b16 %v992
    %v1089 = vunpack.c.l.b16 %v993
    %v1090 = vunpack.c.l.b16 %v994
    %v1091 = vunpack.c.l.b16 %v995
    %v1092 = vunpack.c.l.b16 %v996
    %v1093 = vunpack.c.l.b16 %v997
    %v1094 = vpack.c.b16 %v1079, %v1078
    %v1095 = vpack.c.b16 %v1081, %v1080
    %v1096 = vpack.c.b16 %v1083, %v1082
    %v1097 = vpack.c.b16 %v1085, %v1084
    %v1098 = vpack.c.b16 %v1087, %v1086
    %v1099 = vpack.c.b16 %v1089, %v1088
    %v1100 = vpack.c.b16 %v1091, %v1090
    %v1101 = vpack.c.b16 %v1093, %v1092
    %1110 = vmatpush.bf16.msra.mxu0 %v978
    %1111 = vmatpush.bf16.msra.mxu0 %v974
    %1112 = vmatpush.bf16.msra.mxu0 %v970
    %1113 = vmatpush.bf16.msra.mxu0 %v966
    %1114 = vmatpush.bf16.msra.mxu0 %v962
    %1115 = vmatpush.bf16.msra.mxu0 %v958
    %1116 = vmatpush.bf16.msra.mxu0 %v954
    %1117 = vmatpush.bf16.msra.mxu0 %v950
    %1118 = vmatmul.bf16.gmra.mxu0 %v1094
    %v1119 = vpop.f32.mrf.mxu0
    %v1120 = vadd.f32 %v1000, %v1119
    %v1121 = vpop.f32.mrf.mxu0
    %v1122 = vadd.f32 %v1004, %v1121
    %1123 = vmatmul.bf16.gmra.mxu0 %v1095
    %v1124 = vpop.f32.mrf.mxu0
    %v1125 = vadd.f32 %v1008, %v1124
    %v1126 = vpop.f32.mrf.mxu0
    %v1127 = vadd.f32 %v1012, %v1126
    %1128 = vmatmul.bf16.gmra.mxu0 %v1096
    %v1129 = vpop.f32.mrf.mxu0
    %v1130 = vadd.f32 %v1016, %v1129
    %v1131 = vpop.f32.mrf.mxu0
    %v1132 = vadd.f32 %v1020, %v1131
    %1133 = vmatmul.bf16.gmra.mxu0 %v1097
    %v1134 = vpop.f32.mrf.mxu0
    %v1135 = vadd.f32 %v1024, %v1134
    %v1136 = vpop.f32.mrf.mxu0
    %v1137 = vadd.f32 %v1028, %v1136
    %1138 = vmatmul.bf16.gmra.mxu0 %v1098
    %v1139 = vpop.f32.mrf.mxu0
    %v1140 = vadd.f32 %v1032, %v1139
    %v1141 = vpop.f32.mrf.mxu0
    %v1142 = vadd.f32 %v1036, %v1141
    %1143 = vmatmul.bf16.gmra.mxu0 %v1099
    %v1144 = vpop.f32.mrf.mxu0
    %v1145 = vadd.f32 %v1040, %v1144
    %v1146 = vpop.f32.mrf.mxu0
    %v1147 = vadd.f32 %v1044, %v1146
    %1148 = vmatmul.bf16.gmra.mxu0 %v1100
    %v1149 = vpop.f32.mrf.mxu0
    %v1150 = vadd.f32 %v1048, %v1149
    %v1151 = vpop.f32.mrf.mxu0
    %v1152 = vadd.f32 %v1052, %v1151
    %1153 = vmatmul.bf16.gmra.mxu0 %v1101
    %v1154 = vpop.f32.mrf.mxu0
    %v1155 = vadd.f32 %v1056, %v1154
    %v1156 = vpop.f32.mrf.mxu0
    %v1157 = vadd.f32 %v1060, %v1156
    %1158 = vdwg.mxu0
    %1159 = vmatpush.bf16.msra.mxu0 %v979
    %1160 = vmatpush.bf16.msra.mxu0 %v975
    %1161 = vmatpush.bf16.msra.mxu0 %v971
    %1162 = vmatpush.bf16.msra.mxu0 %v967
    %1163 = vmatpush.bf16.msra.mxu0 %v963
    %1164 = vmatpush.bf16.msra.mxu0 %v959
    %1165 = vmatpush.bf16.msra.mxu0 %v955
    %1166 = vmatpush.bf16.msra.mxu0 %v951
    %1167 = vmatmul.bf16.gmra.mxu0 %v1094
    %v1168 = vpop.f32.mrf.mxu0
    %v1169 = vadd.f32 %v1000, %v1168
    %v1170 = vpop.f32.mrf.mxu0
    %v1171 = vadd.f32 %v1004, %v1170
    %1172 = vmatmul.bf16.gmra.mxu0 %v1095
    %v1173 = vpop.f32.mrf.mxu0
    %v1174 = vadd.f32 %v1008, %v1173
    %v1175 = vpop.f32.mrf.mxu0
    %v1176 = vadd.f32 %v1012, %v1175
    %1177 = vmatmul.bf16.gmra.mxu0 %v1096
    %v1178 = vpop.f32.mrf.mxu0
    %v1179 = vadd.f32 %v1016, %v1178
    %v1180 = vpop.f32.mrf.mxu0
    %v1181 = vadd.f32 %v1020, %v1180
    %1182 = vmatmul.bf16.gmra.mxu0 %v1097
    %v1183 = vpop.f32.mrf.mxu0
    %v1184 = vadd.f32 %v1024, %v1183
    %v1185 = vpop.f32.mrf.mxu0
    %v1186 = vadd.f32 %v1028, %v1185
    %1187 = vmatmul.bf16.gmra.mxu0 %v1098
    %v1188 = vpop.f32.mrf.mxu0
    %v1189 = vadd.f32 %v1032, %v1188
    %v1190 = vpop.f32.mrf.mxu0
    %v1191 = vadd.f32 %v1036, %v1190
    %1192 = vmatmul.bf16.gmra.mxu0 %v1099
    %v1193 = vpop.f32.mrf.mxu0
    %v1194 = vadd.f32 %v1040, %v1193
    %v1195 = vpop.f32.mrf.mxu0
    %v1196 = vadd.f32 %v1044, %v1195
    %1197 = vmatmul.bf16.gmra.mxu0 %v1100
    %v1198 = vpop.f32.mrf.mxu0
    %v1199 = vadd.f32 %v1048, %v1198
    %v1200 = vpop.f32.mrf.mxu0
    %v1201 = vadd.f32 %v1052, %v1200
    %1202 = vmatmul.bf16.gmra.mxu0 %v1101
    %v1203 = vpop.f32.mrf.mxu0
    %v1204 = vadd.f32 %v1056, %v1203
    %v1205 = vpop.f32.mrf.mxu0
    %v1206 = vadd.f32 %v1060, %v1205
    %1207 = vdwg.mxu0
    %1208 = vmatpush.bf16.msra.mxu0 %v980
    %1209 = vmatpush.bf16.msra.mxu0 %v976
    %1210 = vmatpush.bf16.msra.mxu0 %v972
    %1211 = vmatpush.bf16.msra.mxu0 %v968
    %1212 = vmatpush.bf16.msra.mxu0 %v964
    %1213 = vmatpush.bf16.msra.mxu0 %v960
    %1214 = vmatpush.bf16.msra.mxu0 %v956
    %1215 = vmatpush.bf16.msra.mxu0 %v952
    %1216 = vmatmul.bf16.gmra.mxu0 %v1094
    %v1217 = vpop.f32.mrf.mxu0
    %v1218 = vadd.f32 %v1000, %v1217
    %v1219 = vpop.f32.mrf.mxu0
    %v1220 = vadd.f32 %v1004, %v1219
    %1221 = vmatmul.bf16.gmra.mxu0 %v1095
    %v1222 = vpop.f32.mrf.mxu0
    %v1223 = vadd.f32 %v1008, %v1222
    %v1224 = vpop.f32.mrf.mxu0
    %v1225 = vadd.f32 %v1012, %v1224
    %1226 = vmatmul.bf16.gmra.mxu0 %v1096
    %v1227 = vpop.f32.mrf.mxu0
    %v1228 = vadd.f32 %v1016, %v1227
    %v1229 = vpop.f32.mrf.mxu0
    %v1230 = vadd.f32 %v1020, %v1229
    %1231 = vmatmul.bf16.gmra.mxu0 %v1097
    %v1232 = vpop.f32.mrf.mxu0
    %v1233 = vadd.f32 %v1024, %v1232
    %v1234 = vpop.f32.mrf.mxu0
    %v1235 = vadd.f32 %v1028, %v1234
    %1236 = vmatmul.bf16.gmra.mxu0 %v1098
    %v1237 = vpop.f32.mrf.mxu0
    %v1238 = vadd.f32 %v1032, %v1237
    %v1239 = vpop.f32.mrf.mxu0
    %v1240 = vadd.f32 %v1036, %v1239
    %1241 = vmatmul.bf16.gmra.mxu0 %v1099
    %v1242 = vpop.f32.mrf.mxu0
    %v1243 = vadd.f32 %v1040, %v1242
    %v1244 = vpop.f32.mrf.mxu0
    %v1245 = vadd.f32 %v1044, %v1244
    %1246 = vmatmul.bf16.gmra.mxu0 %v1100
    %v1247 = vpop.f32.mrf.mxu0
    %v1248 = vadd.f32 %v1048, %v1247
    %v1249 = vpop.f32.mrf.mxu0
    %v1250 = vadd.f32 %v1052, %v1249
    %1251 = vmatmul.bf16.gmra.mxu0 %v1101
    %v1252 = vpop.f32.mrf.mxu0
    %v1253 = vadd.f32 %v1056, %v1252
    %v1254 = vpop.f32.mrf.mxu0
    %v1255 = vadd.f32 %v1060, %v1254
    %1256 = vdwg.mxu0
    %1257 = vmatpush.bf16.msra.mxu0 %v981
    %1258 = vmatpush.bf16.msra.mxu0 %v977
    %1259 = vmatpush.bf16.msra.mxu0 %v973
    %1260 = vmatpush.bf16.msra.mxu0 %v969
    %1261 = vmatpush.bf16.msra.mxu0 %v965
    %1262 = vmatpush.bf16.msra.mxu0 %v961
    %1263 = vmatpush.bf16.msra.mxu0 %v957
    %1264 = vmatpush.bf16.msra.mxu0 %v953
    %1265 = vmatmul.bf16.gmra.mxu0 %v1094
    %v1266 = vpop.f32.mrf.mxu0
    %v1267 = vadd.f32 %v1000, %v1266
    %v1268 = vpop.f32.mrf.mxu0
    %v1269 = vadd.f32 %v1004, %v1268
    %1270 = vmatmul.bf16.gmra.mxu0 %v1095
    %v1271 = vpop.f32.mrf.mxu0
    %v1272 = vadd.f32 %v1008, %v1271
    %v1273 = vpop.f32.mrf.mxu0
    %v1274 = vadd.f32 %v1012, %v1273
    %1275 = vmatmul.bf16.gmra.mxu0 %v1096
    %v1276 = vpop.f32.mrf.mxu0
    %v1277 = vadd.f32 %v1016, %v1276
    %v1278 = vpop.f32.mrf.mxu0
    %v1279 = vadd.f32 %v1020, %v1278
    %1280 = vmatmul.bf16.gmra.mxu0 %v1097
    %v1281 = vpop.f32.mrf.mxu0
    %v1282 = vadd.f32 %v1024, %v1281
    %v1283 = vpop.f32.mrf.mxu0
    %v1284 = vadd.f32 %v1028, %v1283
    %1285 = vmatmul.bf16.gmra.mxu0 %v1098
    %v1286 = vpop.f32.mrf.mxu0
    %v1287 = vadd.f32 %v1032, %v1286
    %v1288 = vpop.f32.mrf.mxu0
    %v1289 = vadd.f32 %v1036, %v1288
    %1290 = vmatmul.bf16.gmra.mxu0 %v1099
    %v1291 = vpop.f32.mrf.mxu0
    %v1292 = vadd.f32 %v1040, %v1291
    %v1293 = vpop.f32.mrf.mxu0
    %v1294 = vadd.f32 %v1044, %v1293
    %1295 = vmatmul.bf16.gmra.mxu0 %v1100
    %v1296 = vpop.f32.mrf.mxu0
    %v1297 = vadd.f32 %v1048, %v1296
    %v1298 = vpop.f32.mrf.mxu0
    %v1299 = vadd.f32 %v1052, %v1298
    %1300 = vmatmul.bf16.gmra.mxu0 %v1101
    %v1301 = vpop.f32.mrf.mxu0
    %v1302 = vadd.f32 %v1056, %v1301
    %v1303 = vpop.f32.mrf.mxu0
    %v1304 = vadd.f32 %v1060, %v1303
    %1305 = vdwg.mxu0
    %v1306 = vmax.f32 %v1120, 0.0
    %v1307 = vmax.f32 %v1169, 0.0
    %v1308 = vmax.f32 %v1218, 0.0
    %v1309 = vmax.f32 %v1267, 0.0
    %v1310 = vmax.f32 %v1122, 0.0
    %v1311 = vmax.f32 %v1171, 0.0
    %v1312 = vmax.f32 %v1220, 0.0
    %v1313 = vmax.f32 %v1269, 0.0
    %v1314 = vmax.f32 %v1125, 0.0
    %v1315 = vmax.f32 %v1174, 0.0
    %v1316 = vmax.f32 %v1223, 0.0
    %v1317 = vmax.f32 %v1272, 0.0
    %v1318 = vmax.f32 %v1127, 0.0
    %v1319 = vmax.f32 %v1176, 0.0
    %v1320 = vmax.f32 %v1225, 0.0
    %v1321 = vmax.f32 %v1274, 0.0
    %v1322 = vmax.f32 %v1130, 0.0
    %v1323 = vmax.f32 %v1179, 0.0
    %v1324 = vmax.f32 %v1228, 0.0
    %v1325 = vmax.f32 %v1277, 0.0
    %v1326 = vmax.f32 %v1132, 0.0
    %v1327 = vmax.f32 %v1181, 0.0
    %v1328 = vmax.f32 %v1230, 0.0
    %v1329 = vmax.f32 %v1279, 0.0
    %v1330 = vmax.f32 %v1135, 0.0
    %v1331 = vmax.f32 %v1184, 0.0
    %v1332 = vmax.f32 %v1233, 0.0
    %v1333 = vmax.f32 %v1282, 0.0
    %v1334 = vmax.f32 %v1137, 0.0
    %v1335 = vmax.f32 %v1186, 0.0
    %v1336 = vmax.f32 %v1235, 0.0
    %v1337 = vmax.f32 %v1284, 0.0
    %v1338 = vmax.f32 %v1140, 0.0
    %v1339 = vmax.f32 %v1189, 0.0
    %v1340 = vmax.f32 %v1238, 0.0
    %v1341 = vmax.f32 %v1287, 0.0
    %v1342 = vmax.f32 %v1142, 0.0
    %v1343 = vmax.f32 %v1191, 0.0
    %v1344 = vmax.f32 %v1240, 0.0
    %v1345 = vmax.f32 %v1289, 0.0
    %v1346 = vmax.f32 %v1145, 0.0
    %v1347 = vmax.f32 %v1194, 0.0
    %v1348 = vmax.f32 %v1243, 0.0
    %v1349 = vmax.f32 %v1292, 0.0
    %v1350 = vmax.f32 %v1147, 0.0
    %v1351 = vmax.f32 %v1196, 0.0
    %v1352 = vmax.f32 %v1245, 0.0
    %v1353 = vmax.f32 %v1294, 0.0
    %v1354 = vmax.f32 %v1150, 0.0
    %v1355 = vmax.f32 %v1199, 0.0
    %v1356 = vmax.f32 %v1248, 0.0
    %v1357 = vmax.f32 %v1297, 0.0
    %v1358 = vmax.f32 %v1152, 0.0
    %v1359 = vmax.f32 %v1201, 0.0
    %v1360 = vmax.f32 %v1250, 0.0
    %v1361 = vmax.f32 %v1299, 0.0
    %v1362 = vmax.f32 %v1155, 0.0
    %v1363 = vmax.f32 %v1204, 0.0
    %v1364 = vmax.f32 %v1253, 0.0
    %v1365 = vmax.f32 %v1302, 0.0
    %v1366 = vmax.f32 %v1157, 0.0
    %v1367 = vmax.f32 %v1206, 0.0
    %v1368 = vmax.f32 %v1255, 0.0
    %v1369 = vmax.f32 %v1304, 0.0
    %1370 = vset.pattern.permute.xlu0 5
    %1371 = vperm.xlu0 %1370, %v29
    %v1372 = vpop.permute.xlu0 %1371
    %1374 = vset.pattern.permute.xlu0 5
    %1375 = vperm.xlu0 %1374, %v30
    %v1376 = vpop.permute.xlu0 %1375
    %1378 = vset.pattern.permute.xlu0 5
    %1379 = vperm.xlu0 %1378, %v31
    %v1380 = vpop.permute.xlu0 %1379
    %1382 = vset.pattern.permute.xlu0 5
    %1383 = vperm.xlu0 %1382, %v32
    %v1384 = vpop.permute.xlu0 %1383
    %1386 = vset.pattern.permute.xlu0 5
    %1387 = vperm.xlu0 %1386, %v33
    %v1388 = vpop.permute.xlu0 %1387
    %1390 = vset.pattern.permute.xlu0 5
    %1391 = vperm.xlu0 %1390, %v34
    %v1392 = vpop.permute.xlu0 %1391
    %1394 = vset.pattern.permute.xlu0 5
    %1395 = vperm.xlu0 %1394, %v35
    %v1396 = vpop.permute.xlu0 %1395
    %1398 = vset.pattern.permute.xlu0 5
    %1399 = vperm.xlu0 %1398, %v36
    %v1400 = vpop.permute.xlu0 %1399
    %1402 = vset.pattern.permute.xlu0 5
    %1403 = vperm.xlu0 %1402, %v37
    %v1404 = vpop.permute.xlu0 %1403
    %1406 = vset.pattern.permute.xlu0 5
    %1407 = vperm.xlu0 %1406, %v38
    %v1408 = vpop.permute.xlu0 %1407
    %1410 = vset.pattern.permute.xlu0 5
    %1411 = vperm.xlu0 %1410, %v39
    %v1412 = vpop.permute.xlu0 %1411
    %1414 = vset.pattern.permute.xlu0 5
    %1415 = vperm.xlu0 %1414, %v40
    %v1416 = vpop.permute.xlu0 %1415
    %1418 = vset.pattern.permute.xlu0 5
    %1419 = vperm.xlu0 %1418, %v41
    %v1420 = vpop.permute.xlu0 %1419
    %1422 = vset.pattern.permute.xlu0 5
    %1423 = vperm.xlu0 %1422, %v42
    %v1424 = vpop.permute.xlu0 %1423
    %1426 = vset.pattern.permute.xlu0 5
    %1427 = vperm.xlu0 %1426, %v43
    %v1428 = vpop.permute.xlu0 %1427
    %1430 = vset.pattern.permute.xlu0 5
    %1431 = vperm.xlu0 %1430, %v44
    %v1432 = vpop.permute.xlu0 %1431
    %v1434 = vmul.f32 %v1306, %v1372
    %v1435 = vmul.f32 %v1310, %v1376
    %v1436 = vmul.f32 %v1314, %v1380
    %v1437 = vmul.f32 %v1318, %v1384
    %v1438 = vmul.f32 %v1322, %v1388
    %v1439 = vmul.f32 %v1326, %v1392
    %v1440 = vmul.f32 %v1330, %v1396
    %v1441 = vmul.f32 %v1334, %v1400
    %v1442 = vmul.f32 %v1338, %v1404
    %v1443 = vmul.f32 %v1342, %v1408
    %v1444 = vmul.f32 %v1346, %v1412
    %v1445 = vmul.f32 %v1350, %v1416
    %v1446 = vmul.f32 %v1354, %v1420
    %v1447 = vmul.f32 %v1358, %v1424
    %v1448 = vmul.f32 %v1362, %v1428
    %v1449 = vmul.f32 %v1366, %v1432
    %v1450 = vadd.f32 %v1434, %v1435
    %v1451 = vadd.f32 %v1450, %v1436
    %v1452 = vadd.f32 %v1451, %v1437
    %v1453 = vadd.f32 %v1452, %v1438
    %v1454 = vadd.f32 %v1453, %v1439
    %v1455 = vadd.f32 %v1454, %v1440
    %v1456 = vadd.f32 %v1455, %v1441
    %v1457 = vadd.f32 %v1456, %v1442
    %v1458 = vadd.f32 %v1457, %v1443
    %v1459 = vadd.f32 %v1458, %v1444
    %v1460 = vadd.f32 %v1459, %v1445
    %v1461 = vadd.f32 %v1460, %v1446
    %v1462 = vadd.f32 %v1461, %v1447
    %v1463 = vadd.f32 %v1462, %v1448
    %v1464 = vadd.f32 %v1463, %v1449
    %v1465 = vrot.slane %v1464, 4
    %v1466 = vadd.f32 %v1464, %v1465
    %v1467 = vrot.slane %v1466, 2
    %v1468 = vadd.f32 %v1466, %v1467
    %v1469 = vrot.slane %v1468, 1
    %v1470 = vadd.f32 %v1468, %v1469
    %v1471 = vmul.f32 %v1307, %v1372
    %v1472 = vmul.f32 %v1311, %v1376
    %v1473 = vmul.f32 %v1315, %v1380
    %v1474 = vmul.f32 %v1319, %v1384
    %v1475 = vmul.f32 %v1323, %v1388
    %v1476 = vmul.f32 %v1327, %v1392
    %v1477 = vmul.f32 %v1331, %v1396
    %v1478 = vmul.f32 %v1335, %v1400
    %v1479 = vmul.f32 %v1339, %v1404
    %v1480 = vmul.f32 %v1343, %v1408
    %v1481 = vmul.f32 %v1347, %v1412
    %v1482 = vmul.f32 %v1351, %v1416
    %v1483 = vmul.f32 %v1355, %v1420
    %v1484 = vmul.f32 %v1359, %v1424
    %v1485 = vmul.f32 %v1363, %v1428
    %v1486 = vmul.f32 %v1367, %v1432
    %v1487 = vadd.f32 %v1471, %v1472
    %v1488 = vadd.f32 %v1487, %v1473
    %v1489 = vadd.f32 %v1488, %v1474
    %v1490 = vadd.f32 %v1489, %v1475
    %v1491 = vadd.f32 %v1490, %v1476
    %v1492 = vadd.f32 %v1491, %v1477
    %v1493 = vadd.f32 %v1492, %v1478
    %v1494 = vadd.f32 %v1493, %v1479
    %v1495 = vadd.f32 %v1494, %v1480
    %v1496 = vadd.f32 %v1495, %v1481
    %v1497 = vadd.f32 %v1496, %v1482
    %v1498 = vadd.f32 %v1497, %v1483
    %v1499 = vadd.f32 %v1498, %v1484
    %v1500 = vadd.f32 %v1499, %v1485
    %v1501 = vadd.f32 %v1500, %v1486
    %v1502 = vrot.slane %v1501, 4
    %v1503 = vadd.f32 %v1501, %v1502
    %v1504 = vrot.slane %v1503, 2
    %v1505 = vadd.f32 %v1503, %v1504
    %v1506 = vrot.slane %v1505, 1
    %v1507 = vadd.f32 %v1505, %v1506
    %v1508 = vmul.f32 %v1308, %v1372
    %v1509 = vmul.f32 %v1312, %v1376
    %v1510 = vmul.f32 %v1316, %v1380
    %v1511 = vmul.f32 %v1320, %v1384
    %v1512 = vmul.f32 %v1324, %v1388
    %v1513 = vmul.f32 %v1328, %v1392
    %v1514 = vmul.f32 %v1332, %v1396
    %v1515 = vmul.f32 %v1336, %v1400
    %v1516 = vmul.f32 %v1340, %v1404
    %v1517 = vmul.f32 %v1344, %v1408
    %v1518 = vmul.f32 %v1348, %v1412
    %v1519 = vmul.f32 %v1352, %v1416
    %v1520 = vmul.f32 %v1356, %v1420
    %v1521 = vmul.f32 %v1360, %v1424
    %v1522 = vmul.f32 %v1364, %v1428
    %v1523 = vmul.f32 %v1368, %v1432
    %v1524 = vadd.f32 %v1508, %v1509
    %v1525 = vadd.f32 %v1524, %v1510
    %v1526 = vadd.f32 %v1525, %v1511
    %v1527 = vadd.f32 %v1526, %v1512
    %v1528 = vadd.f32 %v1527, %v1513
    %v1529 = vadd.f32 %v1528, %v1514
    %v1530 = vadd.f32 %v1529, %v1515
    %v1531 = vadd.f32 %v1530, %v1516
    %v1532 = vadd.f32 %v1531, %v1517
    %v1533 = vadd.f32 %v1532, %v1518
    %v1534 = vadd.f32 %v1533, %v1519
    %v1535 = vadd.f32 %v1534, %v1520
    %v1536 = vadd.f32 %v1535, %v1521
    %v1537 = vadd.f32 %v1536, %v1522
    %v1538 = vadd.f32 %v1537, %v1523
    %v1539 = vrot.slane %v1538, 4
    %v1540 = vadd.f32 %v1538, %v1539
    %v1541 = vrot.slane %v1540, 2
    %v1542 = vadd.f32 %v1540, %v1541
    %v1543 = vrot.slane %v1542, 1
    %v1544 = vadd.f32 %v1542, %v1543
    %v1545 = vmul.f32 %v1309, %v1372
    %v1546 = vmul.f32 %v1313, %v1376
    %v1547 = vmul.f32 %v1317, %v1380
    %v1548 = vmul.f32 %v1321, %v1384
    %v1549 = vmul.f32 %v1325, %v1388
    %v1550 = vmul.f32 %v1329, %v1392
    %v1551 = vmul.f32 %v1333, %v1396
    %v1552 = vmul.f32 %v1337, %v1400
    %v1553 = vmul.f32 %v1341, %v1404
    %v1554 = vmul.f32 %v1345, %v1408
    %v1555 = vmul.f32 %v1349, %v1412
    %v1556 = vmul.f32 %v1353, %v1416
    %v1557 = vmul.f32 %v1357, %v1420
    %v1558 = vmul.f32 %v1361, %v1424
    %v1559 = vmul.f32 %v1365, %v1428
    %v1560 = vmul.f32 %v1369, %v1432
    %v1561 = vadd.f32 %v1545, %v1546
    %v1562 = vadd.f32 %v1561, %v1547
    %v1563 = vadd.f32 %v1562, %v1548
    %v1564 = vadd.f32 %v1563, %v1549
    %v1565 = vadd.f32 %v1564, %v1550
    %v1566 = vadd.f32 %v1565, %v1551
    %v1567 = vadd.f32 %v1566, %v1552
    %v1568 = vadd.f32 %v1567, %v1553
    %v1569 = vadd.f32 %v1568, %v1554
    %v1570 = vadd.f32 %v1569, %v1555
    %v1571 = vadd.f32 %v1570, %v1556
    %v1572 = vadd.f32 %v1571, %v1557
    %v1573 = vadd.f32 %v1572, %v1558
    %v1574 = vadd.f32 %v1573, %v1559
    %v1575 = vadd.f32 %v1574, %v1560
    %v1576 = vrot.slane %v1575, 4
    %v1577 = vadd.f32 %v1575, %v1576
    %v1578 = vrot.slane %v1577, 2
    %v1579 = vadd.f32 %v1577, %v1578
    %v1580 = vrot.slane %v1579, 1
    %v1581 = vadd.f32 %v1579, %v1580
    %vm1582 = vcmask 1040384
    %v1583 = vsel %vm1582, %v1470, %v1507
    %v1584 = vsel %vm268, %v1583, %v1544
    %v1585 = vsel %vm269, %v1584, %v1581
    %s1586 = sld [smem:[#allocation2]]
    %v1587 = vstv %s1586
    %v1588 = vadd.f32 %v1585, %v1587
    %1589 = vst [vmem:[#allocation3] sm:$0xf] %v1588
    // Predicated region
    $region30: #{tpu_custom_call.1} parent=1 // pred_check
      _
    $region31: #{tpu_custom_call.1} parent=1 // pred_check_branch
      %1591 = sbr.rel (0) target = $region33
    $region32: #{tpu_custom_call.1} parent=1 // pred_region
      %1593 = vsyncadd [#allocation4], 0
      %s1595 = sshll.u32 [#allocation3], 4
      %s1596 = int_to_ptr.vmem [resolvable:$true] %s1595
      %s1597 = sshll.u32 %s7, 4
      %s1598 = int_to_ptr.hbm [resolvable:$true] %s1597
      %1600 = dma.vmem_to_hbm [thread:$0]  %s1596, 64, %s1598, [#allocation4]
    $region33: #{tpu_custom_call.1} parent=1 // pred_fallthru
      _
    // Predicated region
    $region34: #{tpu_custom_call.1} parent=1 // pred_check
      _
    $region35: #{tpu_custom_call.1} parent=1 // pred_check_branch
      %1602 = sbr.rel (0) target = $region37
    $region36: #{tpu_custom_call.1} parent=1 // pred_region
      %1604 = dma.done [#allocation4], 64
    $region37: #{tpu_custom_call.1} parent=1 // pred_fallthru
      _
    %1605 = vsyncpa [#allocation4], 1

</llo_original>
